<compile_context>
chip_gen: v5e
topology: v5e:2x2
jax: 0.10.0
libtpu: 0.0.40
codegen_flags: <defaults>
</compile_context>

<pallas_src>
import functools
import math

import jax
import jax.numpy as jnp
from jax import lax
from jax.experimental import pallas as pl
from jax.experimental.pallas import tpu as pltpu


_LN_EPS = 1e-5  # torch.nn.LayerNorm default


# ----------------------------------------------------------------------------
# In-kernel helpers
# ----------------------------------------------------------------------------
def _layernorm(x, gamma, beta):
    mu = jnp.mean(x, axis=-1, keepdims=True)
    xc = x - mu
    var = jnp.mean(xc * xc, axis=-1, keepdims=True)
    return xc * lax.rsqrt(var + _LN_EPS) * gamma + beta


def _fill_im2col(x, x3_ref):
    """Fill x3_ref (T, 3C) with [x[t-1] | x[t] | x[t+1]] (zero-padded ends).

    Turns a k=3 'same' Conv1d into ONE matmul with contraction depth 3*C.
    """
    T, C = x.shape
    zrow = jnp.zeros((1, C), x.dtype)
    x3_ref[:, C:2 * C] = x                      # center tap
    x3_ref[1:T, 0:C] = x[0:T - 1, :]            # left tap  (x[t-1])
    x3_ref[0:1, 0:C] = zrow
    x3_ref[0:T - 1, 2 * C:3 * C] = x[1:T, :]    # right tap (x[t+1])
    x3_ref[T - 1:T, 2 * C:3 * C] = zrow


# ----------------------------------------------------------------------------
# Kernel 1: norm1 + merged Q/K/V projection convs (per batch)
# ----------------------------------------------------------------------------
def _norm_qkv_kernel(x_ref, g1_ref, b1_ref, wqkv_ref, bqkv_ref, qkv_ref, x3_ref):
    # x_ref:    (T, H)   time-major input block
    # wqkv_ref: (3H, 3H) rows = [q|k|v] output channels, cols = tap*H + in_channel
    # bqkv_ref: (3H, 1)
    # qkv_ref:  (3H, T)  channel-major output, so the wrapper reshape to
    #                    (3, T, nh*A) reproduces torch's `.view` as a free bitcast.
    pre = _layernorm(x_ref[...].astype(jnp.float32), g1_ref[...], b1_ref[...])
    _fill_im2col(pre, x3_ref)
    # "NT" matmul: contract both operands on their tap*H axis; output stays
    # channel-major with no materialized transpose of the activations.
    qkv = lax.dot_general(wqkv_ref[...], x3_ref[...],
                          (((1,), (1,)), ((), ())),
                          preferred_element_type=jnp.float32)
    qkv_ref[...] = (qkv + bqkv_ref[...]).astype(qkv_ref.dtype)


# ----------------------------------------------------------------------------
# Kernel 2: scaled-dot-product attention, all heads of one batch per grid step
# NOTE: matches the torch module exactly — scores divided by attention_size
#       (NOT sqrt(attention_size)).
# ----------------------------------------------------------------------------
def _attention_kernel(qkv_ref, o_ref, *, n_heads, attention_size):
    # qkv_ref: (3, T, H) where [..., i, h*A + a] is torch's post-`.view` layout
    # o_ref:   (T, H)    same layout (== torch transpose(1,2).contiguous())
    inv_scale = 1.0 / float(attention_size)
    q_all = qkv_ref[0] * inv_scale            # fold 1/A into Q once for all heads
    k_all = qkv_ref[1]
    v_all = qkv_ref[2]
    for h in range(n_heads):                  # static unroll; tiny per-head matmuls
        lo = h * attention_size
        hi = lo + attention_size
        q = q_all[:, lo:hi]                   # (T, A)
        k = k_all[:, lo:hi]
        v = v_all[:, lo:hi]
        # Q @ K^T without materializing K^T (contract the A axes directly).
        s = lax.dot_general(q, k, (((1,), (1,)), ((), ())),
                            preferred_element_type=jnp.float32)   # (T, T)
        s = s - jnp.max(s, axis=-1, keepdims=True)
        p = jnp.exp(s)
        l = jnp.sum(p, axis=-1, keepdims=True)
        out = jnp.dot(p, v, preferred_element_type=jnp.float32)   # (T, A)
        # EUP reciprocal instead of a VALU divide.
        o_ref[:, lo:hi] = (out * pl.reciprocal(l, approx=True)).astype(o_ref.dtype)


# ----------------------------------------------------------------------------
# Kernel 3: fc conv + residual + norm2 + conv1 + ReLU + conv2 + residual
# ----------------------------------------------------------------------------
def _mha_out_ffn_kernel(attn_ref, x_ref, g2_ref, b2_ref,
                        wfc_ref, bfc_ref, w1_ref, b1_ref, w2_ref, b2c_ref,
                        o_ref, x3h_ref, x3c_ref):
    # attn_ref: (H, T) channel-major attention output (post torch .view)
    # x_ref:    (T, H) original block input (residual)
    attn_tm = jnp.transpose(attn_ref[...].astype(jnp.float32))       # (T, H)

    # fc conv (k=3 same, H -> H)
    _fill_im2col(attn_tm, x3h_ref)
    fc = jnp.dot(x3h_ref[...], wfc_ref[...],
                 preferred_element_type=jnp.float32) + bfc_ref[...]
    h1 = fc + x_ref[...].astype(jnp.float32)                         # residual 1

    # norm2 -> conv1 -> ReLU -> conv2 -> residual 2
    pre2 = _layernorm(h1, g2_ref[...], b2_ref[...])
    _fill_im2col(pre2, x3h_ref)
    t1 = jnp.dot(x3h_ref[...], w1_ref[...],
                 preferred_element_type=jnp.float32) + b1_ref[...]
    t1 = jnp.maximum(t1, 0.0)
    _fill_im2col(t1, x3c_ref)
    t2 = jnp.dot(x3c_ref[...], w2_ref[...],
                 preferred_element_type=jnp.float32) + b2c_ref[...]
    o_ref[...] = (t2 + h1).astype(o_ref.dtype)


# ----------------------------------------------------------------------------
# Weight repacking (trace-time, params only)
# ----------------------------------------------------------------------------
def _pack_w_cm(w):
    # torch Conv1d weight (O, I, 3) -> (O, 3*I) with columns ordered tap*I + i
    o, i, k = w.shape
    return jnp.transpose(w, (0, 2, 1)).reshape(o, k * i)


def _pack_w_tm(w):
    # torch Conv1d weight (O, I, 3) -> (3*I, O) with rows ordered tap*I + i
    o, i, k = w.shape
    return jnp.transpose(w, (2, 1, 0)).reshape(k * i, o)


# ----------------------------------------------------------------------------
# Full FFTBlock forward
# ----------------------------------------------------------------------------
@functools.partial(jax.jit, static_argnames=("n_heads",))
def fft_block_forward(params, x, *, n_heads):
    B, T, H = x.shape
    A = H // n_heads
    CH = params["conv1_w"].shape[0]
    dt = x.dtype

    cp = pltpu.CompilerParams(dimension_semantics=("parallel",),
                              vmem_limit_bytes=32 * 1024 * 1024)

    # --- stage 1: norm1 + merged Q/K/V projection convs -----------------------
    wqkv = jnp.concatenate([_pack_w_cm(params["w_q_w"]),
                            _pack_w_cm(params["w_k_w"]),
                            _pack_w_cm(params["w_v_w"])], axis=0)      # (3H, 3H)
    bqkv = jnp.concatenate([params["w_q_b"], params["w_k_b"],
                            params["w_v_b"]]).reshape(3 * H, 1)
    g1 = params["norm1_g"].reshape(1, H)
    b1 = params["norm1_b"].reshape(1, H)

    qkv_cm = pl.pallas_call(
        _norm_qkv_kernel,
        out_shape=jax.ShapeDtypeStruct((B, 3 * H, T), dt),
        grid=(B,),
        in_specs=[
            pl.BlockSpec((None, T, H), lambda b: (b, 0, 0)),
            pl.BlockSpec((1, H), lambda b: (0, 0)),
            pl.BlockSpec((1, H), lambda b: (0, 0)),
            pl.BlockSpec((3 * H, 3 * H), lambda b: (0, 0)),
            pl.BlockSpec((3 * H, 1), lambda b: (0, 0)),
        ],
        out_specs=pl.BlockSpec((None, 3 * H, T), lambda b: (b, 0, 0)),
        scratch_shapes=[pltpu.VMEM((T, 3 * H), jnp.float32)],
        compiler_params=cp,
    )(x, g1, b1, wqkv, bqkv)

    # torch `.view(B, -1, nh, A)` of the contiguous (B, H, T) conv output is a pure
    # row-major reinterpretation -> zero-cost bitcast (no HBM pass).
    qkv_v = qkv_cm.reshape(B, 3, T, H)

    # --- stage 2: attention (all heads per grid step) --------------------------
    attn_v = pl.pallas_call(
        functools.partial(_attention_kernel, n_heads=n_heads, attention_size=A),
        out_shape=jax.ShapeDtypeStruct((B, T, H), dt),
        grid=(B,),
        in_specs=[pl.BlockSpec((None, 3, T, H), lambda b: (b, 0, 0, 0))],
        out_specs=pl.BlockSpec((None, T, H), lambda b: (b, 0, 0)),
        compiler_params=cp,
    )(qkv_v)

    # torch `transpose(1,2).contiguous().view(B, H, T)` -> another free bitcast.
    attn_cm = attn_v.reshape(B, H, T)

    # --- stage 3: fc conv + residual + norm2 + conv1 + ReLU + conv2 + residual -
    wfc = _pack_w_tm(params["fc_w"])
    bfc = params["fc_b"].reshape(1, H)
    w1 = _pack_w_tm(params["conv1_w"])
    b1c = params["conv1_b"].reshape(1, CH)
    w2 = _pack_w_tm(params["conv2_w"])
    b2c = params["conv2_b"].reshape(1, H)
    g2 = params["norm2_g"].reshape(1, H)
    b2 = params["norm2_b"].reshape(1, H)

    out = pl.pallas_call(
        _mha_out_ffn_kernel,
        out_shape=jax.ShapeDtypeStruct((B, T, H), dt),
        grid=(B,),
        in_specs=[
            pl.BlockSpec((None, H, T), lambda b: (b, 0, 0)),
            pl.BlockSpec((None, T, H), lambda b: (b, 0, 0)),
            pl.BlockSpec((1, H), lambda b: (0, 0)),
            pl.BlockSpec((1, H), lambda b: (0, 0)),
            pl.BlockSpec((3 * H, H), lambda b: (0, 0)),
            pl.BlockSpec((1, H), lambda b: (0, 0)),
            pl.BlockSpec((3 * H, CH), lambda b: (0, 0)),
            pl.BlockSpec((1, CH), lambda b: (0, 0)),
            pl.BlockSpec((3 * CH, H), lambda b: (0, 0)),
            pl.BlockSpec((1, H), lambda b: (0, 0)),
        ],
        out_specs=pl.BlockSpec((None, T, H), lambda b: (b, 0, 0)),
        scratch_shapes=[pltpu.VMEM((T, 3 * H), jnp.float32),
                        pltpu.VMEM((T, 3 * CH), jnp.float32)],
        compiler_params=cp,
    )(attn_cm, x, g2, b2, wfc, bfc, w1, b1c, w2, b2c)

    return out


# ----------------------------------------------------------------------------
# Pure-JAX reference (verification only; mirrors the torch module exactly)
# ----------------------------------------------------------------------------
def _conv1d_ref(x, w, b):
    y = lax.conv_general_dilated(x, w, window_strides=(1,), padding="SAME",
                                 dimension_numbers=("NCH", "OIH", "NCH"))
    return y + b[None, :, None]


def _layernorm_ref(x, g, b):
    mu = jnp.mean(x, axis=-1, keepdims=True)
    var = jnp.mean((x - mu) ** 2, axis=-1, keepdims=True)
    return (x - mu) / jnp.sqrt(var + _LN_EPS) * g + b


def _mha_ref(params, q, k, v, n_heads):
    B, H, T = q.shape
    A = H // n_heads
    qc = _conv1d_ref(q, params["w_q_w"], params["w_q_b"])
    kc = _conv1d_ref(k, params["w_k_w"], params["w_k_b"])
    vc = _conv1d_ref(v, params["w_v_w"], params["w_v_b"])
    qh = jnp.transpose(qc.reshape(B, -1, n_heads, A), (0, 2, 1, 3))
    kh = jnp.transpose(kc.reshape(B, -1, n_heads, A), (0, 2, 3, 1))
    vh = jnp.transpose(vc.reshape(B, -1, n_heads, A), (0, 2, 1, 3))
    s = jnp.einsum("bhta,bhas->bhts", qh, kh) / A
    p = jax.nn.softmax(s, axis=-1)
    o = jnp.einsum("bhts,bhsa->bhta", p, vh)
    o = jnp.transpose(o, (0, 2, 1, 3)).reshape(B, n_heads * A, -1)
    return _conv1d_ref(o, params["fc_w"], params["fc_b"])


def _fft_block_ref(params, x, n_heads):
    pre = _layernorm_ref(x, params["norm1_g"], params["norm1_b"]).transpose(0, 2, 1)
    x1 = x.transpose(0, 2, 1) + _mha_ref(params, pre, pre, pre, n_heads)   # (B,H,T)
    pre2 = _layernorm_ref(x1.transpose(0, 2, 1),
                          params["norm2_g"], params["norm2_b"]).transpose(0, 2, 1)
    tmp = jax.nn.relu(_conv1d_ref(pre2, params["conv1_w"], params["conv1_b"]))
    tmp = _conv1d_ref(tmp, params["conv2_w"], params["conv2_b"])
    out = tmp + x1
    return out.transpose(0, 2, 1)


# ----------------------------------------------------------------------------
# Deterministic parameter init (Conv1d-style uniform bounds, LN near identity)
# ----------------------------------------------------------------------------
def init_params(key, hidden_size, conv_hidden_size):
    ks = jax.random.split(key, 16)

    def conv_init(kw, kb, out_c, in_c):
        bound = 1.0 / math.sqrt(in_c * 3)
        w = jax.random.uniform(kw, (out_c, in_c, 3), jnp.float32, -bound, bound)
        b = jax.random.uniform(kb, (out_c,), jnp.float32, -bound, bound)
        return w, b

    p = {}
    p["w_q_w"], p["w_q_b"] = conv_init(ks[0], ks[1], hidden_size, hidden_size)
    p["w_k_w"], p["w_k_b"] = conv_init(ks[2], ks[3], hidden_size, hidden_size)
    p["w_v_w"], p["w_v_b"] = conv_init(ks[4], ks[5], hidden_size, hidden_size)
    p["fc_w"], p["fc_b"] = conv_init(ks[6], ks[7], hidden_size, hidden_size)
    p["conv1_w"], p["conv1_b"] = conv_init(ks[8], ks[9], conv_hidden_size, hidden_size)
    p["conv2_w"], p["conv2_b"] = conv_init(ks[10], ks[11], hidden_size, conv_hidden_size)
    p["norm1_g"] = 1.0 + 0.1 * jax.random.normal(ks[12], (hidden_size,), jnp.float32)
    p["norm1_b"] = 0.1 * jax.random.normal(ks[13], (hidden_size,), jnp.float32)
    p["norm2_g"] = 1.0 + 0.1 * jax.random.normal(ks[14], (hidden_size,), jnp.float32)
    p["norm2_b"] = 0.1 * jax.random.normal(ks[15], (hidden_size,), jnp.float32)
    return p


if __name__ == "__main__":
    B, T, H, NH, CH = 2, 16, 32, 4, 64   # attention_size = 8

    key = jax.random.PRNGKey(0)
    kp, kx = jax.random.split(key)
    params = init_params(kp, H, CH)
    x = jax.random.normal(kx, (B, T, H), jnp.float32)   # (batch, seq, hidden)

    out = jax.block_until_ready(fft_block_forward(params, x, n_heads=NH))
    ref = jax.block_until_ready(_fft_block_ref(params, x, NH))

    assert out.shape == (B, T, H)
    max_err = float(jnp.max(jnp.abs(out - ref)))
    assert bool(jnp.allclose(out, ref, rtol=1e-2, atol=2e-3)), \
        f"mismatch: max abs diff = {max_err}"

    print("KERNEL_OK")
</pallas_src>

<mosaic_0001>
module attributes {stable_mosaic.version = 11 : i64} {
  func.func @_attention_kernel(%arg0: i32, %arg1: memref<1x3x16x32xf32, #tpu.memory_space<vmem>>, %arg2: memref<1x16x32xf32, #tpu.memory_space<vmem>>) attributes {dimension_semantics = [#tpu.dimension_semantics<parallel>], iteration_bounds = array<i64: 2>, scalar_prefetch = 0 : i64, scratch_operands = 0 : i64, tpu.core_type = #tpu.core_type<tc>, window_params = [{transform_indices = @transform_0, window_bounds = array<i64: 1, 3, 16, 32>}, {transform_indices = @transform_1, window_bounds = array<i64: 1, 16, 32>}]} {
    %c0 = arith.constant 0 : index
    %c0_0 = arith.constant 0 : index
    %c0_1 = arith.constant 0 : index
    %c0_2 = arith.constant 0 : index
    %0 = vector.load %arg1[%c0, %c0_0, %c0_1, %c0_2] : memref<1x3x16x32xf32, #tpu.memory_space<vmem>>, vector<1x1x16x32xf32>
    %1 = vector.shape_cast %0 : vector<1x1x16x32xf32> to vector<16x32xf32>
    %cst = arith.constant 1.250000e-01 : f32
    %2 = vector.broadcast %cst : f32 to vector<16x32xf32>
    %3 = arith.mulf %1, %2 : vector<16x32xf32>
    %c0_3 = arith.constant 0 : index
    %c1 = arith.constant 1 : index
    %c0_4 = arith.constant 0 : index
    %c0_5 = arith.constant 0 : index
    %4 = vector.load %arg1[%c0_3, %c1, %c0_4, %c0_5] : memref<1x3x16x32xf32, #tpu.memory_space<vmem>>, vector<1x1x16x32xf32>
    %5 = vector.shape_cast %4 : vector<1x1x16x32xf32> to vector<16x32xf32>
    %c0_6 = arith.constant 0 : index
    %c2 = arith.constant 2 : index
    %c0_7 = arith.constant 0 : index
    %c0_8 = arith.constant 0 : index
    %6 = vector.load %arg1[%c0_6, %c2, %c0_7, %c0_8] : memref<1x3x16x32xf32, #tpu.memory_space<vmem>>, vector<1x1x16x32xf32>
    %7 = vector.shape_cast %6 : vector<1x1x16x32xf32> to vector<16x32xf32>
    %8 = vector.extract_strided_slice %3 {offsets = [0, 0], sizes = [16, 8], strides = [1, 1]} : vector<16x32xf32> to vector<16x8xf32>
    %9 = vector.extract_strided_slice %5 {offsets = [0, 0], sizes = [16, 8], strides = [1, 1]} : vector<16x32xf32> to vector<16x8xf32>
    %10 = vector.extract_strided_slice %7 {offsets = [0, 0], sizes = [16, 8], strides = [1, 1]} : vector<16x32xf32> to vector<16x8xf32>
    %cst_9 = arith.constant dense<0.000000e+00> : vector<16x16xf32>
    %11 = tpu.matmul %8, %9, %cst_9 {dimension_numbers = #tpu.dot_dimension_numbers<[1], [1], [0], [0], [0, 0, 1, 0], [], []>} : vector<16x8xf32>, vector<16x8xf32>, vector<16x16xf32> -> vector<16x16xf32>
    %cst_10 = arith.constant dense<0xFF800000> : vector<16xf32>
    %12 = vector.multi_reduction <maximumf>, %11, %cst_10 [1] : vector<16x16xf32> to vector<16xf32>
    %13 = vector.shape_cast %12 : vector<16xf32> to vector<16x1xf32>
    %14 = vector.broadcast %13 : vector<16x1xf32> to vector<16x16xf32>
    %15 = arith.subf %11, %14 : vector<16x16xf32>
    %16 = math.exp %15 : vector<16x16xf32>
    %cst_11 = arith.constant dense<0.000000e+00> : vector<16xf32>
    %17 = vector.multi_reduction <add>, %16, %cst_11 [1] : vector<16x16xf32> to vector<16xf32>
    %18 = vector.shape_cast %17 : vector<16xf32> to vector<16x1xf32>
    %cst_12 = arith.constant dense<0.000000e+00> : vector<16x8xf32>
    %19 = tpu.matmul %16, %10, %cst_12 {dimension_numbers = #tpu.dot_dimension_numbers<[1], [0], [0], [1], [0, 0, 1, 1], [], []>} : vector<16x16xf32>, vector<16x8xf32>, vector<16x8xf32> -> vector<16x8xf32>
    %20 = tpu.reciprocal %18 {approx = true} : vector<16x1xf32> -> vector<16x1xf32>
    %21 = vector.broadcast %20 : vector<16x1xf32> to vector<16x8xf32>
    %22 = arith.mulf %19, %21 : vector<16x8xf32>
    %c0_13 = arith.constant 0 : index
    %c0_14 = arith.constant 0 : index
    %c0_15 = arith.constant 0 : index
    %23 = vector.load %arg2[%c0_13, %c0_14, %c0_15] : memref<1x16x32xf32, #tpu.memory_space<vmem>>, vector<1x16x8xf32>
    %24 = vector.shape_cast %23 : vector<1x16x8xf32> to vector<16x8xf32>
    %25 = vector.shape_cast %22 : vector<16x8xf32> to vector<1x16x8xf32>
    tpu.vector_store %arg2[%c0_13, %c0_14, %c0_15], %25 {strides = array<i32>} : memref<1x16x32xf32, #tpu.memory_space<vmem>>, vector<1x16x8xf32>,
    %26 = vector.extract_strided_slice %3 {offsets = [0, 8], sizes = [16, 8], strides = [1, 1]} : vector<16x32xf32> to vector<16x8xf32>
    %27 = vector.extract_strided_slice %5 {offsets = [0, 8], sizes = [16, 8], strides = [1, 1]} : vector<16x32xf32> to vector<16x8xf32>
    %28 = vector.extract_strided_slice %7 {offsets = [0, 8], sizes = [16, 8], strides = [1, 1]} : vector<16x32xf32> to vector<16x8xf32>
    %cst_16 = arith.constant dense<0.000000e+00> : vector<16x16xf32>
    %29 = tpu.matmul %26, %27, %cst_16 {dimension_numbers = #tpu.dot_dimension_numbers<[1], [1], [0], [0], [0, 0, 1, 0], [], []>} : vector<16x8xf32>, vector<16x8xf32>, vector<16x16xf32> -> vector<16x16xf32>
    %cst_17 = arith.constant dense<0xFF800000> : vector<16xf32>
    %30 = vector.multi_reduction <maximumf>, %29, %cst_17 [1] : vector<16x16xf32> to vector<16xf32>
    %31 = vector.shape_cast %30 : vector<16xf32> to vector<16x1xf32>
    %32 = vector.broadcast %31 : vector<16x1xf32> to vector<16x16xf32>
    %33 = arith.subf %29, %32 : vector<16x16xf32>
    %34 = math.exp %33 : vector<16x16xf32>
    %cst_18 = arith.constant dense<0.000000e+00> : vector<16xf32>
    %35 = vector.multi_reduction <add>, %34, %cst_18 [1] : vector<16x16xf32> to vector<16xf32>
    %36 = vector.shape_cast %35 : vector<16xf32> to vector<16x1xf32>
    %cst_19 = arith.constant dense<0.000000e+00> : vector<16x8xf32>
    %37 = tpu.matmul %34, %28, %cst_19 {dimension_numbers = #tpu.dot_dimension_numbers<[1], [0], [0], [1], [0, 0, 1, 1], [], []>} : vector<16x16xf32>, vector<16x8xf32>, vector<16x8xf32> -> vector<16x8xf32>
    %38 = tpu.reciprocal %36 {approx = true} : vector<16x1xf32> -> vector<16x1xf32>
    %39 = vector.broadcast %38 : vector<16x1xf32> to vector<16x8xf32>
    %40 = arith.mulf %37, %39 : vector<16x8xf32>
    %c0_20 = arith.constant 0 : index
    %c0_21 = arith.constant 0 : index
    %c8 = arith.constant 8 : index
    %41 = vector.load %arg2[%c0_20, %c0_21, %c8] : memref<1x16x32xf32, #tpu.memory_space<vmem>>, vector<1x16x8xf32>
    %42 = vector.shape_cast %41 : vector<1x16x8xf32> to vector<16x8xf32>
    %43 = vector.shape_cast %40 : vector<16x8xf32> to vector<1x16x8xf32>
    tpu.vector_store %arg2[%c0_20, %c0_21, %c8], %43 {strides = array<i32>} : memref<1x16x32xf32, #tpu.memory_space<vmem>>, vector<1x16x8xf32>,
    %44 = vector.extract_strided_slice %3 {offsets = [0, 16], sizes = [16, 8], strides = [1, 1]} : vector<16x32xf32> to vector<16x8xf32>
    %45 = vector.extract_strided_slice %5 {offsets = [0, 16], sizes = [16, 8], strides = [1, 1]} : vector<16x32xf32> to vector<16x8xf32>
    %46 = vector.extract_strided_slice %7 {offsets = [0, 16], sizes = [16, 8], strides = [1, 1]} : vector<16x32xf32> to vector<16x8xf32>
    %cst_22 = arith.constant dense<0.000000e+00> : vector<16x16xf32>
    %47 = tpu.matmul %44, %45, %cst_22 {dimension_numbers = #tpu.dot_dimension_numbers<[1], [1], [0], [0], [0, 0, 1, 0], [], []>} : vector<16x8xf32>, vector<16x8xf32>, vector<16x16xf32> -> vector<16x16xf32>
    %cst_23 = arith.constant dense<0xFF800000> : vector<16xf32>
    %48 = vector.multi_reduction <maximumf>, %47, %cst_23 [1] : vector<16x16xf32> to vector<16xf32>
    %49 = vector.shape_cast %48 : vector<16xf32> to vector<16x1xf32>
    %50 = vector.broadcast %49 : vector<16x1xf32> to vector<16x16xf32>
    %51 = arith.subf %47, %50 : vector<16x16xf32>
    %52 = math.exp %51 : vector<16x16xf32>
    %cst_24 = arith.constant dense<0.000000e+00> : vector<16xf32>
    %53 = vector.multi_reduction <add>, %52, %cst_24 [1] : vector<16x16xf32> to vector<16xf32>
    %54 = vector.shape_cast %53 : vector<16xf32> to vector<16x1xf32>
    %cst_25 = arith.constant dense<0.000000e+00> : vector<16x8xf32>
    %55 = tpu.matmul %52, %46, %cst_25 {dimension_numbers = #tpu.dot_dimension_numbers<[1], [0], [0], [1], [0, 0, 1, 1], [], []>} : vector<16x16xf32>, vector<16x8xf32>, vector<16x8xf32> -> vector<16x8xf32>
    %56 = tpu.reciprocal %54 {approx = true} : vector<16x1xf32> -> vector<16x1xf32>
    %57 = vector.broadcast %56 : vector<16x1xf32> to vector<16x8xf32>
    %58 = arith.mulf %55, %57 : vector<16x8xf32>
    %c0_26 = arith.constant 0 : index
    %c0_27 = arith.constant 0 : index
    %c16 = arith.constant 16 : index
    %59 = vector.load %arg2[%c0_26, %c0_27, %c16] : memref<1x16x32xf32, #tpu.memory_space<vmem>>, vector<1x16x8xf32>
    %60 = vector.shape_cast %59 : vector<1x16x8xf32> to vector<16x8xf32>
    %61 = vector.shape_cast %58 : vector<16x8xf32> to vector<1x16x8xf32>
    tpu.vector_store %arg2[%c0_26, %c0_27, %c16], %61 {strides = array<i32>} : memref<1x16x32xf32, #tpu.memory_space<vmem>>, vector<1x16x8xf32>,
    %62 = vector.extract_strided_slice %3 {offsets = [0, 24], sizes = [16, 8], strides = [1, 1]} : vector<16x32xf32> to vector<16x8xf32>
    %63 = vector.extract_strided_slice %5 {offsets = [0, 24], sizes = [16, 8], strides = [1, 1]} : vector<16x32xf32> to vector<16x8xf32>
    %64 = vector.extract_strided_slice %7 {offsets = [0, 24], sizes = [16, 8], strides = [1, 1]} : vector<16x32xf32> to vector<16x8xf32>
    %cst_28 = arith.constant dense<0.000000e+00> : vector<16x16xf32>
    %65 = tpu.matmul %62, %63, %cst_28 {dimension_numbers = #tpu.dot_dimension_numbers<[1], [1], [0], [0], [0, 0, 1, 0], [], []>} : vector<16x8xf32>, vector<16x8xf32>, vector<16x16xf32> -> vector<16x16xf32>
    %cst_29 = arith.constant dense<0xFF800000> : vector<16xf32>
    %66 = vector.multi_reduction <maximumf>, %65, %cst_29 [1] : vector<16x16xf32> to vector<16xf32>
    %67 = vector.shape_cast %66 : vector<16xf32> to vector<16x1xf32>
    %68 = vector.broadcast %67 : vector<16x1xf32> to vector<16x16xf32>
    %69 = arith.subf %65, %68 : vector<16x16xf32>
    %70 = math.exp %69 : vector<16x16xf32>
    %cst_30 = arith.constant dense<0.000000e+00> : vector<16xf32>
    %71 = vector.multi_reduction <add>, %70, %cst_30 [1] : vector<16x16xf32> to vector<16xf32>
    %72 = vector.shape_cast %71 : vector<16xf32> to vector<16x1xf32>
    %cst_31 = arith.constant dense<0.000000e+00> : vector<16x8xf32>
    %73 = tpu.matmul %70, %64, %cst_31 {dimension_numbers = #tpu.dot_dimension_numbers<[1], [0], [0], [1], [0, 0, 1, 1], [], []>} : vector<16x16xf32>, vector<16x8xf32>, vector<16x8xf32> -> vector<16x8xf32>
    %74 = tpu.reciprocal %72 {approx = true} : vector<16x1xf32> -> vector<16x1xf32>
    %75 = vector.broadcast %74 : vector<16x1xf32> to vector<16x8xf32>
    %76 = arith.mulf %73, %75 : vector<16x8xf32>
    %c0_32 = arith.constant 0 : index
    %c0_33 = arith.constant 0 : index
    %c24 = arith.constant 24 : index
    %77 = vector.load %arg2[%c0_32, %c0_33, %c24] : memref<1x16x32xf32, #tpu.memory_space<vmem>>, vector<1x16x8xf32>
    %78 = vector.shape_cast %77 : vector<1x16x8xf32> to vector<16x8xf32>
    %79 = vector.shape_cast %76 : vector<16x8xf32> to vector<1x16x8xf32>
    tpu.vector_store %arg2[%c0_32, %c0_33, %c24], %79 {strides = array<i32>} : memref<1x16x32xf32, #tpu.memory_space<vmem>>, vector<1x16x8xf32>,
    return
  }
  func.func @transform_0(%arg0: i32) -> (i32, i32, i32, i32) {
    %c0_i32 = arith.constant 0 : i32
    %c0_i32_0 = arith.constant 0 : i32
    %c0_i32_1 = arith.constant 0 : i32
    %c0_i32_2 = arith.constant 0 : i32
    return %arg0, %c0_i32, %c0_i32_0, %c0_i32_1 : i32, i32, i32, i32
  }
  func.func @transform_1(%arg0: i32) -> (i32, i32, i32) {
    %c0_i32 = arith.constant 0 : i32
    %c0_i32_0 = arith.constant 0 : i32
    %c0_i32_1 = arith.constant 0 : i32
    return %arg0, %c0_i32, %c0_i32_0 : i32, i32, i32
  }
}

module attributes {stable_mosaic.version = 11 : i64} {
  func.func @_norm_qkv_kernel(%arg0: i32, %arg1: memref<1x16x32xf32, #tpu.memory_space<vmem>>, %arg2: memref<1x32xf32, #tpu.memory_space<vmem>>, %arg3: memref<1x32xf32, #tpu.memory_space<vmem>>, %arg4: memref<96x96xf32, #tpu.memory_space<vmem>>, %arg5: memref<96x1xf32, #tpu.memory_space<vmem>>, %arg6: memref<1x96x16xf32, #tpu.memory_space<vmem>>, %arg7: memref<16x96xf32, #tpu.memory_space<vmem>>) attributes {dimension_semantics = [#tpu.dimension_semantics<parallel>], iteration_bounds = array<i64: 2>, scalar_prefetch = 0 : i64, scratch_operands = 1 : i64, tpu.core_type = #tpu.core_type<tc>, window_params = [{transform_indices = @transform_0, window_bounds = array<i64: 1, 16, 32>}, {pipeline_mode = #tpu.pipeline_mode<synchronous>, transform_indices = @transform_1, window_bounds = array<i64: 1, 32>}, {pipeline_mode = #tpu.pipeline_mode<synchronous>, transform_indices = @transform_2, window_bounds = array<i64: 1, 32>}, {pipeline_mode = #tpu.pipeline_mode<synchronous>, transform_indices = @transform_3, window_bounds = array<i64: 96, 96>}, {pipeline_mode = #tpu.pipeline_mode<synchronous>, transform_indices = @transform_4, window_bounds = array<i64: 96, 1>}, {transform_indices = @transform_5, window_bounds = array<i64: 1, 96, 16>}]} {
    %c0 = arith.constant 0 : index
    %c0_0 = arith.constant 0 : index
    %c0_1 = arith.constant 0 : index
    %0 = vector.load %arg1[%c0, %c0_0, %c0_1] : memref<1x16x32xf32, #tpu.memory_space<vmem>>, vector<1x16x32xf32>
    %1 = vector.shape_cast %0 : vector<1x16x32xf32> to vector<16x32xf32>
    %c0_2 = arith.constant 0 : index
    %c0_3 = arith.constant 0 : index
    %2 = vector.load %arg2[%c0_2, %c0_3] : memref<1x32xf32, #tpu.memory_space<vmem>>, vector<1x32xf32>
    %c0_4 = arith.constant 0 : index
    %c0_5 = arith.constant 0 : index
    %3 = vector.load %arg3[%c0_4, %c0_5] : memref<1x32xf32, #tpu.memory_space<vmem>>, vector<1x32xf32>
    %cst = arith.constant dense<0.000000e+00> : vector<16xf32>
    %4 = vector.multi_reduction <add>, %1, %cst [1] : vector<16x32xf32> to vector<16xf32>
    %5 = vector.shape_cast %4 : vector<16xf32> to vector<16x1xf32>
    %cst_6 = arith.constant 3.200000e+01 : f32
    %6 = vector.broadcast %cst_6 : f32 to vector<16x1xf32>
    %7 = arith.divf %5, %6 : vector<16x1xf32>
    %8 = vector.broadcast %7 : vector<16x1xf32> to vector<16x32xf32>
    %9 = arith.subf %1, %8 : vector<16x32xf32>
    %10 = arith.mulf %9, %9 : vector<16x32xf32>
    %cst_7 = arith.constant dense<0.000000e+00> : vector<16xf32>
    %11 = vector.multi_reduction <add>, %10, %cst_7 [1] : vector<16x32xf32> to vector<16xf32>
    %12 = vector.shape_cast %11 : vector<16xf32> to vector<16x1xf32>
    %cst_8 = arith.constant 3.200000e+01 : f32
    %13 = vector.broadcast %cst_8 : f32 to vector<16x1xf32>
    %14 = arith.divf %12, %13 : vector<16x1xf32>
    %cst_9 = arith.constant 9.99999974E-6 : f32
    %15 = vector.broadcast %cst_9 : f32 to vector<16x1xf32>
    %16 = arith.addf %14, %15 : vector<16x1xf32>
    %17 = math.rsqrt %16 : vector<16x1xf32>
    %18 = vector.broadcast %17 : vector<16x1xf32> to vector<16x32xf32>
    %19 = arith.mulf %9, %18 : vector<16x32xf32>
    %20 = vector.broadcast %2 : vector<1x32xf32> to vector<16x32xf32>
    %21 = arith.mulf %19, %20 : vector<16x32xf32>
    %22 = vector.broadcast %3 : vector<1x32xf32> to vector<16x32xf32>
    %23 = arith.addf %21, %22 : vector<16x32xf32>
    %cst_10 = arith.constant 0.000000e+00 : f32
    %24 = vector.broadcast %cst_10 : f32 to vector<1x32xf32>
    %c0_11 = arith.constant 0 : index
    %c32 = arith.constant 32 : index
    %25 = vector.load %arg7[%c0_11, %c32] : memref<16x96xf32, #tpu.memory_space<vmem>>, vector<16x32xf32>
    tpu.vector_store %arg7[%c0_11, %c32], %23 {strides = array<i32>} : memref<16x96xf32, #tpu.memory_space<vmem>>, vector<16x32xf32>,
    %26 = vector.extract_strided_slice %23 {offsets = [0, 0], sizes = [15, 32], strides = [1, 1]} : vector<16x32xf32> to vector<15x32xf32>
    %c1 = arith.constant 1 : index
    %c0_12 = arith.constant 0 : index
    %27 = vector.load %arg7[%c1, %c0_12] : memref<16x96xf32, #tpu.memory_space<vmem>>, vector<15x32xf32>
    tpu.vector_store %arg7[%c1, %c0_12], %26 {strides = array<i32>} : memref<16x96xf32, #tpu.memory_space<vmem>>, vector<15x32xf32>,
    %c0_13 = arith.constant 0 : index
    %c0_14 = arith.constant 0 : index
    %28 = vector.load %arg7[%c0_13, %c0_14] : memref<16x96xf32, #tpu.memory_space<vmem>>, vector<1x32xf32>
    tpu.vector_store %arg7[%c0_13, %c0_14], %24 {strides = array<i32>} : memref<16x96xf32, #tpu.memory_space<vmem>>, vector<1x32xf32>,
    %29 = vector.extract_strided_slice %23 {offsets = [1, 0], sizes = [15, 32], strides = [1, 1]} : vector<16x32xf32> to vector<15x32xf32>
    %c0_15 = arith.constant 0 : index
    %c64 = arith.constant 64 : index
    %30 = vector.load %arg7[%c0_15, %c64] : memref<16x96xf32, #tpu.memory_space<vmem>>, vector<15x32xf32>
    tpu.vector_store %arg7[%c0_15, %c64], %29 {strides = array<i32>} : memref<16x96xf32, #tpu.memory_space<vmem>>, vector<15x32xf32>,
    %c15 = arith.constant 15 : index
    %c64_16 = arith.constant 64 : index
    %31 = vector.load %arg7[%c15, %c64_16] : memref<16x96xf32, #tpu.memory_space<vmem>>, vector<1x32xf32>
    tpu.vector_store %arg7[%c15, %c64_16], %24 {strides = array<i32>} : memref<16x96xf32, #tpu.memory_space<vmem>>, vector<1x32xf32>,
    %c0_17 = arith.constant 0 : index
    %c0_18 = arith.constant 0 : index
    %32 = vector.load %arg4[%c0_17, %c0_18] : memref<96x96xf32, #tpu.memory_space<vmem>>, vector<96x96xf32>
    %c0_19 = arith.constant 0 : index
    %c0_20 = arith.constant 0 : index
    %33 = vector.load %arg7[%c0_19, %c0_20] : memref<16x96xf32, #tpu.memory_space<vmem>>, vector<16x96xf32>
    %cst_21 = arith.constant dense<0.000000e+00> : vector<96x16xf32>
    %34 = tpu.matmul %32, %33, %cst_21 {dimension_numbers = #tpu.dot_dimension_numbers<[1], [1], [0], [0], [0, 0, 1, 0], [], []>} : vector<96x96xf32>, vector<16x96xf32>, vector<96x16xf32> -> vector<96x16xf32>
    %c0_22 = arith.constant 0 : index
    %c0_23 = arith.constant 0 : index
    %35 = vector.load %arg5[%c0_22, %c0_23] : memref<96x1xf32, #tpu.memory_space<vmem>>, vector<96x1xf32>
    %36 = vector.broadcast %35 : vector<96x1xf32> to vector<96x16xf32>
    %37 = arith.addf %34, %36 : vector<96x16xf32>
    %c0_24 = arith.constant 0 : index
    %c0_25 = arith.constant 0 : index
    %c0_26 = arith.constant 0 : index
    %38 = vector.load %arg6[%c0_24, %c0_25, %c0_26] : memref<1x96x16xf32, #tpu.memory_space<vmem>>, vector<1x96x16xf32>
    %39 = vector.shape_cast %38 : vector<1x96x16xf32> to vector<96x16xf32>
    %40 = vector.shape_cast %37 : vector<96x16xf32> to vector<1x96x16xf32>
    tpu.vector_store %arg6[%c0_24, %c0_25, %c0_26], %40 {strides = array<i32>} : memref<1x96x16xf32, #tpu.memory_space<vmem>>, vector<1x96x16xf32>,
    return
  }
  func.func @transform_0(%arg0: i32) -> (i32, i32, i32) {
    %c0_i32 = arith.constant 0 : i32
    %c0_i32_0 = arith.constant 0 : i32
    %c0_i32_1 = arith.constant 0 : i32
    return %arg0, %c0_i32, %c0_i32_0 : i32, i32, i32
  }
  func.func @transform_1(%arg0: i32) -> (i32, i32) {
    %c0_i32 = arith.constant 0 : i32
    %c0_i32_0 = arith.constant 0 : i32
    %c0_i32_1 = arith.constant 0 : i32
    return %c0_i32, %c0_i32_0 : i32, i32
  }
  func.func @transform_2(%arg0: i32) -> (i32, i32) {
    %c0_i32 = arith.constant 0 : i32
    %c0_i32_0 = arith.constant 0 : i32
    %c0_i32_1 = arith.constant 0 : i32
    return %c0_i32, %c0_i32_0 : i32, i32
  }
  func.func @transform_3(%arg0: i32) -> (i32, i32) {
    %c0_i32 = arith.constant 0 : i32
    %c0_i32_0 = arith.constant 0 : i32
    %c0_i32_1 = arith.constant 0 : i32
    return %c0_i32, %c0_i32_0 : i32, i32
  }
  func.func @transform_4(%arg0: i32) -> (i32, i32) {
    %c0_i32 = arith.constant 0 : i32
    %c0_i32_0 = arith.constant 0 : i32
    %c0_i32_1 = arith.constant 0 : i32
    return %c0_i32, %c0_i32_0 : i32, i32
  }
  func.func @transform_5(%arg0: i32) -> (i32, i32, i32) {
    %c0_i32 = arith.constant 0 : i32
    %c0_i32_0 = arith.constant 0 : i32
    %c0_i32_1 = arith.constant 0 : i32
    return %arg0, %c0_i32, %c0_i32_0 : i32, i32, i32
  }
}

module attributes {stable_mosaic.version = 11 : i64} {
  func.func @_mha_out_ffn_kernel(%arg0: i32, %arg1: memref<1x32x16xf32, #tpu.memory_space<vmem>>, %arg2: memref<1x16x32xf32, #tpu.memory_space<vmem>>, %arg3: memref<1x32xf32, #tpu.memory_space<vmem>>, %arg4: memref<1x32xf32, #tpu.memory_space<vmem>>, %arg5: memref<96x32xf32, #tpu.memory_space<vmem>>, %arg6: memref<1x32xf32, #tpu.memory_space<vmem>>, %arg7: memref<96x64xf32, #tpu.memory_space<vmem>>, %arg8: memref<1x64xf32, #tpu.memory_space<vmem>>, %arg9: memref<192x32xf32, #tpu.memory_space<vmem>>, %arg10: memref<1x32xf32, #tpu.memory_space<vmem>>, %arg11: memref<1x16x32xf32, #tpu.memory_space<vmem>>, %arg12: memref<16x96xf32, #tpu.memory_space<vmem>>, %arg13: memref<16x192xf32, #tpu.memory_space<vmem>>) attributes {dimension_semantics = [#tpu.dimension_semantics<parallel>], iteration_bounds = array<i64: 2>, scalar_prefetch = 0 : i64, scratch_operands = 2 : i64, tpu.core_type = #tpu.core_type<tc>, window_params = [{transform_indices = @transform_0, window_bounds = array<i64: 1, 32, 16>}, {transform_indices = @transform_1, window_bounds = array<i64: 1, 16, 32>}, {pipeline_mode = #tpu.pipeline_mode<synchronous>, transform_indices = @transform_2, window_bounds = array<i64: 1, 32>}, {pipeline_mode = #tpu.pipeline_mode<synchronous>, transform_indices = @transform_3, window_bounds = array<i64: 1, 32>}, {pipeline_mode = #tpu.pipeline_mode<synchronous>, transform_indices = @transform_4, window_bounds = array<i64: 96, 32>}, {pipeline_mode = #tpu.pipeline_mode<synchronous>, transform_indices = @transform_5, window_bounds = array<i64: 1, 32>}, {pipeline_mode = #tpu.pipeline_mode<synchronous>, transform_indices = @transform_6, window_bounds = array<i64: 96, 64>}, {pipeline_mode = #tpu.pipeline_mode<synchronous>, transform_indices = @transform_7, window_bounds = array<i64: 1, 64>}, {pipeline_mode = #tpu.pipeline_mode<synchronous>, transform_indices = @transform_8, window_bounds = array<i64: 192, 32>}, {pipeline_mode = #tpu.pipeline_mode<synchronous>, transform_indices = @transform_9, window_bounds = array<i64: 1, 32>}, {transform_indices = @transform_10, window_bounds = array<i64: 1, 16, 32>}]} {
    %c0 = arith.constant 0 : index
    %c0_0 = arith.constant 0 : index
    %c0_1 = arith.constant 0 : index
    %0 = vector.load %arg1[%c0, %c0_0, %c0_1] : memref<1x32x16xf32, #tpu.memory_space<vmem>>, vector<1x32x16xf32>
    %1 = vector.shape_cast %0 : vector<1x32x16xf32> to vector<32x16xf32>
    %2 = tpu.transpose %1, [1, 0] : vector<32x16xf32> -> vector<16x32xf32>
    %cst = arith.constant 0.000000e+00 : f32
    %3 = vector.broadcast %cst : f32 to vector<1x32xf32>
    %c0_2 = arith.constant 0 : index
    %c32 = arith.constant 32 : index
    %4 = vector.load %arg12[%c0_2, %c32] : memref<16x96xf32, #tpu.memory_space<vmem>>, vector<16x32xf32>
    tpu.vector_store %arg12[%c0_2, %c32], %2 {strides = array<i32>} : memref<16x96xf32, #tpu.memory_space<vmem>>, vector<16x32xf32>,
    %5 = vector.extract_strided_slice %2 {offsets = [0, 0], sizes = [15, 32], strides = [1, 1]} : vector<16x32xf32> to vector<15x32xf32>
    %c1 = arith.constant 1 : index
    %c0_3 = arith.constant 0 : index
    %6 = vector.load %arg12[%c1, %c0_3] : memref<16x96xf32, #tpu.memory_space<vmem>>, vector<15x32xf32>
    tpu.vector_store %arg12[%c1, %c0_3], %5 {strides = array<i32>} : memref<16x96xf32, #tpu.memory_space<vmem>>, vector<15x32xf32>,
    %c0_4 = arith.constant 0 : index
    %c0_5 = arith.constant 0 : index
    %7 = vector.load %arg12[%c0_4, %c0_5] : memref<16x96xf32, #tpu.memory_space<vmem>>, vector<1x32xf32>
    tpu.vector_store %arg12[%c0_4, %c0_5], %3 {strides = array<i32>} : memref<16x96xf32, #tpu.memory_space<vmem>>, vector<1x32xf32>,
    %8 = vector.extract_strided_slice %2 {offsets = [1, 0], sizes = [15, 32], strides = [1, 1]} : vector<16x32xf32> to vector<15x32xf32>
    %c0_6 = arith.constant 0 : index
    %c64 = arith.constant 64 : index
    %9 = vector.load %arg12[%c0_6, %c64] : memref<16x96xf32, #tpu.memory_space<vmem>>, vector<15x32xf32>
    tpu.vector_store %arg12[%c0_6, %c64], %8 {strides = array<i32>} : memref<16x96xf32, #tpu.memory_space<vmem>>, vector<15x32xf32>,
    %c15 = arith.constant 15 : index
    %c64_7 = arith.constant 64 : index
    %10 = vector.load %arg12[%c15, %c64_7] : memref<16x96xf32, #tpu.memory_space<vmem>>, vector<1x32xf32>
    tpu.vector_store %arg12[%c15, %c64_7], %3 {strides = array<i32>} : memref<16x96xf32, #tpu.memory_space<vmem>>, vector<1x32xf32>,
    %c0_8 = arith.constant 0 : index
    %c0_9 = arith.constant 0 : index
    %11 = vector.load %arg12[%c0_8, %c0_9] : memref<16x96xf32, #tpu.memory_space<vmem>>, vector<16x96xf32>
    %c0_10 = arith.constant 0 : index
    %c0_11 = arith.constant 0 : index
    %12 = vector.load %arg5[%c0_10, %c0_11] : memref<96x32xf32, #tpu.memory_space<vmem>>, vector<96x32xf32>
    %cst_12 = arith.constant dense<0.000000e+00> : vector<16x32xf32>
    %13 = tpu.matmul %11, %12, %cst_12 {dimension_numbers = #tpu.dot_dimension_numbers<[1], [0], [0], [1], [0, 0, 1, 1], [], []>} : vector<16x96xf32>, vector<96x32xf32>, vector<16x32xf32> -> vector<16x32xf32>
    %c0_13 = arith.constant 0 : index
    %c0_14 = arith.constant 0 : index
    %14 = vector.load %arg6[%c0_13, %c0_14] : memref<1x32xf32, #tpu.memory_space<vmem>>, vector<1x32xf32>
    %15 = vector.broadcast %14 : vector<1x32xf32> to vector<16x32xf32>
    %16 = arith.addf %13, %15 : vector<16x32xf32>
    %c0_15 = arith.constant 0 : index
    %c0_16 = arith.constant 0 : index
    %c0_17 = arith.constant 0 : index
    %17 = vector.load %arg2[%c0_15, %c0_16, %c0_17] : memref<1x16x32xf32, #tpu.memory_space<vmem>>, vector<1x16x32xf32>
    %18 = vector.shape_cast %17 : vector<1x16x32xf32> to vector<16x32xf32>
    %19 = arith.addf %16, %18 : vector<16x32xf32>
    %c0_18 = arith.constant 0 : index
    %c0_19 = arith.constant 0 : index
    %20 = vector.load %arg3[%c0_18, %c0_19] : memref<1x32xf32, #tpu.memory_space<vmem>>, vector<1x32xf32>
    %c0_20 = arith.constant 0 : index
    %c0_21 = arith.constant 0 : index
    %21 = vector.load %arg4[%c0_20, %c0_21] : memref<1x32xf32, #tpu.memory_space<vmem>>, vector<1x32xf32>
    %cst_22 = arith.constant dense<0.000000e+00> : vector<16xf32>
    %22 = vector.multi_reduction <add>, %19, %cst_22 [1] : vector<16x32xf32> to vector<16xf32>
    %23 = vector.shape_cast %22 : vector<16xf32> to vector<16x1xf32>
    %cst_23 = arith.constant 3.200000e+01 : f32
    %24 = vector.broadcast %cst_23 : f32 to vector<16x1xf32>
    %25 = arith.divf %23, %24 : vector<16x1xf32>
    %26 = vector.broadcast %25 : vector<16x1xf32> to vector<16x32xf32>
    %27 = arith.subf %19, %26 : vector<16x32xf32>
    %28 = arith.mulf %27, %27 : vector<16x32xf32>
    %cst_24 = arith.constant dense<0.000000e+00> : vector<16xf32>
    %29 = vector.multi_reduction <add>, %28, %cst_24 [1] : vector<16x32xf32> to vector<16xf32>
    %30 = vector.shape_cast %29 : vector<16xf32> to vector<16x1xf32>
    %cst_25 = arith.constant 3.200000e+01 : f32
    %31 = vector.broadcast %cst_25 : f32 to vector<16x1xf32>
    %32 = arith.divf %30, %31 : vector<16x1xf32>
    %cst_26 = arith.constant 9.99999974E-6 : f32
    %33 = vector.broadcast %cst_26 : f32 to vector<16x1xf32>
    %34 = arith.addf %32, %33 : vector<16x1xf32>
    %35 = math.rsqrt %34 : vector<16x1xf32>
    %36 = vector.broadcast %35 : vector<16x1xf32> to vector<16x32xf32>
    %37 = arith.mulf %27, %36 : vector<16x32xf32>
    %38 = vector.broadcast %20 : vector<1x32xf32> to vector<16x32xf32>
    %39 = arith.mulf %37, %38 : vector<16x32xf32>
    %40 = vector.broadcast %21 : vector<1x32xf32> to vector<16x32xf32>
    %41 = arith.addf %39, %40 : vector<16x32xf32>
    %cst_27 = arith.constant 0.000000e+00 : f32
    %42 = vector.broadcast %cst_27 : f32 to vector<1x32xf32>
    %c0_28 = arith.constant 0 : index
    %c32_29 = arith.constant 32 : index
    %43 = vector.load %arg12[%c0_28, %c32_29] : memref<16x96xf32, #tpu.memory_space<vmem>>, vector<16x32xf32>
    tpu.vector_store %arg12[%c0_28, %c32_29], %41 {strides = array<i32>} : memref<16x96xf32, #tpu.memory_space<vmem>>, vector<16x32xf32>,
    %44 = vector.extract_strided_slice %41 {offsets = [0, 0], sizes = [15, 32], strides = [1, 1]} : vector<16x32xf32> to vector<15x32xf32>
    %c1_30 = arith.constant 1 : index
    %c0_31 = arith.constant 0 : index
    %45 = vector.load %arg12[%c1_30, %c0_31] : memref<16x96xf32, #tpu.memory_space<vmem>>, vector<15x32xf32>
    tpu.vector_store %arg12[%c1_30, %c0_31], %44 {strides = array<i32>} : memref<16x96xf32, #tpu.memory_space<vmem>>, vector<15x32xf32>,
    %c0_32 = arith.constant 0 : index
    %c0_33 = arith.constant 0 : index
    %46 = vector.load %arg12[%c0_32, %c0_33] : memref<16x96xf32, #tpu.memory_space<vmem>>, vector<1x32xf32>
    tpu.vector_store %arg12[%c0_32, %c0_33], %42 {strides = array<i32>} : memref<16x96xf32, #tpu.memory_space<vmem>>, vector<1x32xf32>,
    %47 = vector.extract_strided_slice %41 {offsets = [1, 0], sizes = [15, 32], strides = [1, 1]} : vector<16x32xf32> to vector<15x32xf32>
    %c0_34 = arith.constant 0 : index
    %c64_35 = arith.constant 64 : index
    %48 = vector.load %arg12[%c0_34, %c64_35] : memref<16x96xf32, #tpu.memory_space<vmem>>, vector<15x32xf32>
    tpu.vector_store %arg12[%c0_34, %c64_35], %47 {strides = array<i32>} : memref<16x96xf32, #tpu.memory_space<vmem>>, vector<15x32xf32>,
    %c15_36 = arith.constant 15 : index
    %c64_37 = arith.constant 64 : index
    %49 = vector.load %arg12[%c15_36, %c64_37] : memref<16x96xf32, #tpu.memory_space<vmem>>, vector<1x32xf32>
    tpu.vector_store %arg12[%c15_36, %c64_37], %42 {strides = array<i32>} : memref<16x96xf32, #tpu.memory_space<vmem>>, vector<1x32xf32>,
    %c0_38 = arith.constant 0 : index
    %c0_39 = arith.constant 0 : index
    %50 = vector.load %arg12[%c0_38, %c0_39] : memref<16x96xf32, #tpu.memory_space<vmem>>, vector<16x96xf32>
    %c0_40 = arith.constant 0 : index
    %c0_41 = arith.constant 0 : index
    %51 = vector.load %arg7[%c0_40, %c0_41] : memref<96x64xf32, #tpu.memory_space<vmem>>, vector<96x64xf32>
    %cst_42 = arith.constant dense<0.000000e+00> : vector<16x64xf32>
    %52 = tpu.matmul %50, %51, %cst_42 {dimension_numbers = #tpu.dot_dimension_numbers<[1], [0], [0], [1], [0, 0, 1, 1], [], []>} : vector<16x96xf32>, vector<96x64xf32>, vector<16x64xf32> -> vector<16x64xf32>
    %c0_43 = arith.constant 0 : index
    %c0_44 = arith.constant 0 : index
    %53 = vector.load %arg8[%c0_43, %c0_44] : memref<1x64xf32, #tpu.memory_space<vmem>>, vector<1x64xf32>
    %54 = vector.broadcast %53 : vector<1x64xf32> to vector<16x64xf32>
    %55 = arith.addf %52, %54 : vector<16x64xf32>
    %cst_45 = arith.constant 0.000000e+00 : f32
    %56 = vector.broadcast %cst_45 : f32 to vector<16x64xf32>
    %57 = arith.maximumf %55, %56 : vector<16x64xf32>
    %cst_46 = arith.constant 0.000000e+00 : f32
    %58 = vector.broadcast %cst_46 : f32 to vector<1x64xf32>
    %c0_47 = arith.constant 0 : index
    %c64_48 = arith.constant 64 : index
    %59 = vector.load %arg13[%c0_47, %c64_48] : memref<16x192xf32, #tpu.memory_space<vmem>>, vector<16x64xf32>
    tpu.vector_store %arg13[%c0_47, %c64_48], %57 {strides = array<i32>} : memref<16x192xf32, #tpu.memory_space<vmem>>, vector<16x64xf32>,
    %60 = vector.extract_strided_slice %57 {offsets = [0, 0], sizes = [15, 64], strides = [1, 1]} : vector<16x64xf32> to vector<15x64xf32>
    %c1_49 = arith.constant 1 : index
    %c0_50 = arith.constant 0 : index
    %61 = vector.load %arg13[%c1_49, %c0_50] : memref<16x192xf32, #tpu.memory_space<vmem>>, vector<15x64xf32>
    tpu.vector_store %arg13[%c1_49, %c0_50], %60 {strides = array<i32>} : memref<16x192xf32, #tpu.memory_space<vmem>>, vector<15x64xf32>,
    %c0_51 = arith.constant 0 : index
    %c0_52 = arith.constant 0 : index
    %62 = vector.load %arg13[%c0_51, %c0_52] : memref<16x192xf32, #tpu.memory_space<vmem>>, vector<1x64xf32>
    tpu.vector_store %arg13[%c0_51, %c0_52], %58 {strides = array<i32>} : memref<16x192xf32, #tpu.memory_space<vmem>>, vector<1x64xf32>,
    %63 = vector.extract_strided_slice %57 {offsets = [1, 0], sizes = [15, 64], strides = [1, 1]} : vector<16x64xf32> to vector<15x64xf32>
    %c0_53 = arith.constant 0 : index
    %c128 = arith.constant 128 : index
    %64 = vector.load %arg13[%c0_53, %c128] : memref<16x192xf32, #tpu.memory_space<vmem>>, vector<15x64xf32>
    tpu.vector_store %arg13[%c0_53, %c128], %63 {strides = array<i32>} : memref<16x192xf32, #tpu.memory_space<vmem>>, vector<15x64xf32>,
    %c15_54 = arith.constant 15 : index
    %c128_55 = arith.constant 128 : index
    %65 = vector.load %arg13[%c15_54, %c128_55] : memref<16x192xf32, #tpu.memory_space<vmem>>, vector<1x64xf32>
    tpu.vector_store %arg13[%c15_54, %c128_55], %58 {strides = array<i32>} : memref<16x192xf32, #tpu.memory_space<vmem>>, vector<1x64xf32>,
    %c0_56 = arith.constant 0 : index
    %c0_57 = arith.constant 0 : index
    %66 = vector.load %arg13[%c0_56, %c0_57] : memref<16x192xf32, #tpu.memory_space<vmem>>, vector<16x192xf32>
    %c0_58 = arith.constant 0 : index
    %c0_59 = arith.constant 0 : index
    %67 = vector.load %arg9[%c0_58, %c0_59] : memref<192x32xf32, #tpu.memory_space<vmem>>, vector<192x32xf32>
    %cst_60 = arith.constant dense<0.000000e+00> : vector<16x32xf32>
    %68 = tpu.matmul %66, %67, %cst_60 {dimension_numbers = #tpu.dot_dimension_numbers<[1], [0], [0], [1], [0, 0, 1, 1], [], []>} : vector<16x192xf32>, vector<192x32xf32>, vector<16x32xf32> -> vector<16x32xf32>
    %c0_61 = arith.constant 0 : index
    %c0_62 = arith.constant 0 : index
    %69 = vector.load %arg10[%c0_61, %c0_62] : memref<1x32xf32, #tpu.memory_space<vmem>>, vector<1x32xf32>
    %70 = vector.broadcast %69 : vector<1x32xf32> to vector<16x32xf32>
    %71 = arith.addf %68, %70 : vector<16x32xf32>
    %72 = arith.addf %71, %19 : vector<16x32xf32>
    %c0_63 = arith.constant 0 : index
    %c0_64 = arith.constant 0 : index
    %c0_65 = arith.constant 0 : index
    %73 = vector.load %arg11[%c0_63, %c0_64, %c0_65] : memref<1x16x32xf32, #tpu.memory_space<vmem>>, vector<1x16x32xf32>
    %74 = vector.shape_cast %73 : vector<1x16x32xf32> to vector<16x32xf32>
    %75 = vector.shape_cast %72 : vector<16x32xf32> to vector<1x16x32xf32>
    tpu.vector_store %arg11[%c0_63, %c0_64, %c0_65], %75 {strides = array<i32>} : memref<1x16x32xf32, #tpu.memory_space<vmem>>, vector<1x16x32xf32>,
    return
  }
  func.func @transform_0(%arg0: i32) -> (i32, i32, i32) {
    %c0_i32 = arith.constant 0 : i32
    %c0_i32_0 = arith.constant 0 : i32
    %c0_i32_1 = arith.constant 0 : i32
    return %arg0, %c0_i32, %c0_i32_0 : i32, i32, i32
  }
  func.func @transform_1(%arg0: i32) -> (i32, i32, i32) {
    %c0_i32 = arith.constant 0 : i32
    %c0_i32_0 = arith.constant 0 : i32
    %c0_i32_1 = arith.constant 0 : i32
    return %arg0, %c0_i32, %c0_i32_0 : i32, i32, i32
  }
  func.func @transform_2(%arg0: i32) -> (i32, i32) {
    %c0_i32 = arith.constant 0 : i32
    %c0_i32_0 = arith.constant 0 : i32
    %c0_i32_1 = arith.constant 0 : i32
    return %c0_i32, %c0_i32_0 : i32, i32
  }
  func.func @transform_3(%arg0: i32) -> (i32, i32) {
    %c0_i32 = arith.constant 0 : i32
    %c0_i32_0 = arith.constant 0 : i32
    %c0_i32_1 = arith.constant 0 : i32
    return %c0_i32, %c0_i32_0 : i32, i32
  }
  func.func @transform_4(%arg0: i32) -> (i32, i32) {
    %c0_i32 = arith.constant 0 : i32
    %c0_i32_0 = arith.constant 0 : i32
    %c0_i32_1 = arith.constant 0 : i32
    return %c0_i32, %c0_i32_0 : i32, i32
  }
  func.func @transform_5(%arg0: i32) -> (i32, i32) {
    %c0_i32 = arith.constant 0 : i32
    %c0_i32_0 = arith.constant 0 : i32
    %c0_i32_1 = arith.constant 0 : i32
    return %c0_i32, %c0_i32_0 : i32, i32
  }
  func.func @transform_6(%arg0: i32) -> (i32, i32) {
    %c0_i32 = arith.constant 0 : i32
    %c0_i32_0 = arith.constant 0 : i32
    %c0_i32_1 = arith.constant 0 : i32
    return %c0_i32, %c0_i32_0 : i32, i32
  }
  func.func @transform_7(%arg0: i32) -> (i32, i32) {
    %c0_i32 = arith.constant 0 : i32
    %c0_i32_0 = arith.constant 0 : i32
    %c0_i32_1 = arith.constant 0 : i32
    return %c0_i32, %c0_i32_0 : i32, i32
  }
  func.func @transform_8(%arg0: i32) -> (i32, i32) {
    %c0_i32 = arith.constant 0 : i32
    %c0_i32_0 = arith.constant 0 : i32
    %c0_i32_1 = arith.constant 0 : i32
    return %c0_i32, %c0_i32_0 : i32, i32
  }
  func.func @transform_9(%arg0: i32) -> (i32, i32) {
    %c0_i32 = arith.constant 0 : i32
    %c0_i32_0 = arith.constant 0 : i32
    %c0_i32_1 = arith.constant 0 : i32
    return %c0_i32, %c0_i32_0 : i32, i32
  }
  func.func @transform_10(%arg0: i32) -> (i32, i32, i32) {
    %c0_i32 = arith.constant 0 : i32
    %c0_i32_0 = arith.constant 0 : i32
    %c0_i32_1 = arith.constant 0 : i32
    return %arg0, %c0_i32, %c0_i32_0 : i32, i32, i32
  }
}

</mosaic_0001>

<llo_original>
// kernel: fft_block_forward.4
$region0: #{fft_block_forward.4}
  #allocation0 [shape = 'u32[]', space=smem, size = 0x4, offset = 0x4, fixed_abs, tag = 'smem constant byte address 0x4 - core index']
  #allocation1 [shape = 'u32[72,128]{1,0:T(1,128)}', space=vmem, size = 0x9000, scoped, tag = 'internal scratch']
  %s0 = inlined_call_operand.vmem [shape: f32[2,3,16,32], index: 0, kind: input, shape index: {}]
  %s1 = inlined_call_operand.vmem [shape: f32[2,16,32], index: 1, kind: output, shape index: {}]
  %s2 = sld [smem:[#allocation0]]
  $region37: #{fft_block_forward.4} parent=0
    _
  %s4 = ssub.s32 1, %s2
  %s5 = scalar_select 0, %s4, %s2
  loop: start=0, step=1, limit=4
  $region2: #{fft_block_forward.4} parent=0 // loop_pre_header
    _
  $region3: #{fft_block_forward.4} parent=0 // loop_header
    %s7 = sphi 0, %s11
    %p8 = scmp.ge.s32.totalorder %s7, 4
    %s17 = sphi 0, %s19
    %s20 = sphi 0, %s17
    %s21 = sphi 0, %s20
    %s37 = sphi 0, %s21
    %s43 = sphi 0, %s45
    %s46 = sphi 0, %s43
    %s47 = sphi 0, %s46
    %s63 = sphi 0, %s47
  $region4: #{fft_block_forward.4} parent=0 // loop_header_branch
    %10 = sbr.rel (%p8) target = $region8
  $region5: #{fft_block_forward.4} parent=0 // loop_body
    %s12 = ssub.s32 %s7, 1
    %s13 = ssub.s32 %s7, 2
    %s14 = sadd.s32 %s7, 1
    %s15 = ssub.s32 %s7, %s14
    %p16 = scmp.eq.s32.totalorder %s15, 0
    %s18 = sadd.s32 %s17, 1
    %s19 = scalar_select %p16, %s17, %s18
    %p22 = pneg %p16
    %p23 = scmp.eq.s32.totalorder %s7, 1
    %p24 = por %p22, %p23
    %p25 = scmp.ne.s32.totalorder %s17, %s20
    %p26 = scmp.eq.s32.totalorder %s7, 0
    %p27 = por %p25, %p26
    %p28 = scmp.ne.s32.totalorder %s17, %s20
    %p29 = scmp.eq.s32.totalorder %s12, 1
    %p30 = por %p28, %p29
    %p31 = scmp.ne.s32.totalorder %s20, %s21
    %p32 = scmp.eq.s32.totalorder %s12, 0
    %p33 = por %p31, %p32
    %p34 = scmp.ne.s32.totalorder %s20, %s21
    %p35 = scmp.eq.s32.totalorder %s13, 1
    %p36 = por %p34, %p35
    %p38 = scmp.ne.s32.totalorder %s21, %s37
    %p39 = scmp.eq.s32.totalorder %s13, 0
    %p40 = por %p38, %p39
    %s41 = ssub.s32 %s7, %s14
    %p42 = scmp.eq.s32.totalorder %s41, 0
    %s44 = sadd.s32 %s43, 1
    %s45 = scalar_select %p42, %s43, %s44
    %p48 = pneg %p42
    %p49 = scmp.eq.s32.totalorder %s7, 1
    %p50 = por %p48, %p49
    %p51 = scmp.ne.s32.totalorder %s43, %s46
    %p52 = scmp.eq.s32.totalorder %s7, 0
    %p53 = por %p51, %p52
    %p54 = scmp.ne.s32.totalorder %s43, %s46
    %p55 = scmp.eq.s32.totalorder %s12, 1
    %p56 = por %p54, %p55
    %p57 = scmp.ne.s32.totalorder %s46, %s47
    %p58 = scmp.eq.s32.totalorder %s12, 0
    %p59 = por %p57, %p58
    %p60 = scmp.ne.s32.totalorder %s46, %s47
    %p61 = scmp.eq.s32.totalorder %s13, 1
    %p62 = por %p60, %p61
    %p64 = scmp.ne.s32.totalorder %s47, %s63
    %p65 = scmp.eq.s32.totalorder %s13, 0
    %p66 = por %p64, %p65
    %p67 = scmp.le.s32.totalorder 1, %s7
    %p68 = scmp.lt.s32.totalorder %s7, 3
    %p69 = pnand %p67, %p68
    %p70 = pneg %p69
    // Predicated region
    $region9: #{fft_block_forward.4} parent=5 // pred_check
      _
    $region10: #{fft_block_forward.4} parent=5 // pred_check_branch
      %72 = sbr.rel (%p69) target = $region12
    $region11: #{fft_block_forward.4} parent=5 // pred_region
      %s73 = ssub.s32 %s7, 1
    $region12: #{fft_block_forward.4} parent=5 // pred_fallthru
      _
    %p74 = scmp.lt.s32.totalorder %s7, 2
    // Predicated region
    $region13: #{fft_block_forward.4} parent=5 // pred_check
      %p75 = pneg %p74
    $region14: #{fft_block_forward.4} parent=5 // pred_check_branch
      %77 = sbr.rel (%p75) target = $region16
    $region15: #{fft_block_forward.4} parent=5 // pred_region
      // Predicated region
      $region17: #{fft_block_forward.4} parent=15 // pred_check
        %p78 = pneg %p27
      $region18: #{fft_block_forward.4} parent=15 // pred_check_branch
        %80 = sbr.rel (%p78) target = $region20
      $region19: #{fft_block_forward.4} parent=15 // pred_region
        %p81 = scmp.lt.s32.totalorder %s7, 1
        %s82 = scalar_select %p81, %s7, 1
        %s83 = smul.addr %s82, 6
        %s84 = smul.addr %s83, 8
        %s85 = scalar_lea.vmem %s0, %s84
      $region20: #{fft_block_forward.4} parent=15 // pred_fallthru
        _
    $region16: #{fft_block_forward.4} parent=5 // pred_fallthru
      _
    %p86 = scmp.le.s32.totalorder 1, %s7
    %p87 = scmp.lt.s32.totalorder %s7, 3
    %p88 = pnand %p86, %p87
    %p89 = pneg %p88
    // Predicated region
    $region21: #{fft_block_forward.4} parent=5 // pred_check
      _
    $region22: #{fft_block_forward.4} parent=5 // pred_check_branch
      %91 = sbr.rel (%p88) target = $region24
    $region23: #{fft_block_forward.4} parent=5 // pred_region
      %s92 = ssub.s32 %s7, 1
      %p93 = scmp.lt.s32.totalorder %s12, 1
      %s94 = scalar_select %p93, %s12, 1
      %s95 = smul.addr %s94, 6
      %s96 = smul.addr %s95, 8
      %s97 = scalar_lea.vmem %s0, %s96
      %p98 = pneg %p33
      %p99 = pneg %p30
      %p100 = pneg %p59
      %p101 = pneg %p56
      %p102 = scmp.lt.s32.totalorder %s12, 1
      %s103 = scalar_select %p102, %s12, 1
      %s104 = smul.addr %s103, 2
      %s105 = smul.addr %s104, 8
      %s106 = scalar_lea.vmem %s1, %s105
      %p107 = scmp.lt.s32.totalorder %s12, 1
      %s108 = scalar_select %p107, %s12, 1
      %s109 = smul.addr %s108, 6
      %s110 = smul.addr %s109, 8
      %s111 = scalar_lea.vmem %s0, %s110
      %p112 = scmp.lt.s32.totalorder %s12, 1
      %s113 = scalar_select %p112, %s12, 1
      %s114 = smul.addr %s113, 2
      %s115 = smul.addr %s114, 8
      %s116 = scalar_lea.vmem %s1, %s115
      %v117 = vld [vmem:[%s111] sm:$0xff]
      %v118 = vld [vmem:[%s111 + $0x8] sm:$0xff]
      %v119 = vmul.f32 %v117, 0.125
      %v120 = vmul.f32 %v118, 0.125
      %s121 = scalar_lea.vmem %s111, 16
      %v122 = vld [vmem:[%s121] sm:$0xff]
      %v123 = vld [vmem:[%s121 + $0x8] sm:$0xff]
      %s124 = scalar_lea.vmem %s111, 32
      %v125 = vld [vmem:[%s124] sm:$0xff]
      %v126 = vld [vmem:[%s124 + $0x8] sm:$0xff]
      %vm127 = vcmask 64512
      %v129 = vsel %vm127, %v119, 0
      %v132 = vsel %vm127, %v120, 0
      %v135 = vsel %vm127, %v122, 0
      %v138 = vsel %vm127, %v123, 0
      %140 = vmatpush.xpose.msra.mxu0 0.0
      %141 = vmatpush.xpose.msra.mxu0 0.0
      %142 = vmatpush.xpose.msra.mxu0 0.0
      %143 = vmatpush.xpose.msra.mxu0 0.0
      %144 = vmatpush.xpose.msra.mxu0 0.0
      %145 = vmatpush.xpose.msra.mxu0 0.0
      %146 = vmatpush.xpose.msra.mxu0 0.0
      %147 = vmatpush.xpose.msra.mxu0 0.0
      %148 = vmatpush.xpose.msra.mxu0 0.0
      %149 = vmatpush.xpose.msra.mxu0 0.0
      %150 = vmatpush.xpose.msra.mxu0 0.0
      %151 = vmatpush.xpose.msra.mxu0 0.0
      %152 = vmatpush.xpose.msra.mxu0 0.0
      %153 = vmatpush.xpose.msra.mxu0 0.0
      %154 = vmatpush.xpose.msra.mxu0 %v138
      %155 = vmatpush.xpose.msra.mxu0 %v135
      %156 = vmatmul.f32.gmra.mxu0 %v129
      %v157 = vpop.f32.mrf.mxu0
      %v158 = vadd.f32 0.0, %v157
      %159 = vmatmul.f32.gmra.mxu0 %v132
      %v160 = vpop.f32.mrf.mxu0
      %v161 = vadd.f32 0.0, %v160
      %162 = vdwg.mxu0
      %vm163 = vcmask 130048
      %v164 = vsel %vm163, %v158, -inf
      %165 = vmax.xlane.f32.xlu0 %v164
      %v166 = vpop.xlane.xlu0 %165
      %v167 = vsel %vm163, %v161, -inf
      %168 = vmax.xlane.f32.xlu0 %v167
      %v169 = vpop.xlane.xlu0 %168
      %v170 = vsub.f32 %v158, %v166
      %v171 = vsub.f32 %v161, %v169
      %v172 = vmul.f32 %v170, 1.442695
      %v173 = vpow.pop %v172
      %v174 = vmul.f32 %v171, 1.442695
      %v175 = vpow.pop %v174
      %v176 = vsel %vm163, %v173, 0.0
      %177 = vadd.xlane.f32.xlu0 %v176
      %v178 = vpop.xlane.xlu0 %177
      %v179 = vsel %vm163, %v175, 0.0
      %180 = vadd.xlane.f32.xlu0 %v179
      %v181 = vpop.xlane.xlu0 %180
      %v183 = vsel %vm163, %v173, 0
      %v186 = vsel %vm163, %v175, 0
      %188 = vmatpush.msra.mxu0 0.0
      %189 = vmatpush.msra.mxu0 0.0
      %190 = vmatpush.msra.mxu0 0.0
      %191 = vmatpush.msra.mxu0 0.0
      %192 = vmatpush.msra.mxu0 0.0
      %193 = vmatpush.msra.mxu0 0.0
      %194 = vmatpush.msra.mxu0 0.0
      %195 = vmatpush.msra.mxu0 0.0
      %196 = vmatpush.msra.mxu0 0.0
      %197 = vmatpush.msra.mxu0 0.0
      %198 = vmatpush.msra.mxu0 0.0
      %199 = vmatpush.msra.mxu0 0.0
      %200 = vmatpush.msra.mxu0 0.0
      %201 = vmatpush.msra.mxu0 0.0
      %202 = vmatpush.msra.mxu0 %v126
      %203 = vmatpush.msra.mxu0 %v125
      %204 = vmatmul.f32.gmra.mxu0 %v183
      %v205 = vpop.f32.mrf.mxu0
      %v206 = vadd.f32 0.0, %v205
      %207 = vmatmul.f32.gmra.mxu0 %v186
      %v208 = vpop.f32.mrf.mxu0
      %v209 = vadd.f32 0.0, %v208
      %210 = vdwg.mxu0
      %v211 = vrcp.pop %v178
      %v212 = vrcp.pop %v181
      %v213 = vmul.f32 %v206, %v211
      %v214 = vmul.f32 %v209, %v212
      %215 = vst.msk [vmem:[%s116] sm:$0xff] %vm127, %v213
      %216 = vst.msk [vmem:[%s116 + $0x8] sm:$0xff] %vm127, %v214
      %217 = vrot.lane.b32.xlu0 %v119, 120
      %v218 = vpop.permute.xlu0 %217
      %219 = vrot.lane.b32.xlu0 %v120, 120
      %v220 = vpop.permute.xlu0 %219
      %221 = vrot.lane.b32.xlu0 %v122, 120
      %v222 = vpop.permute.xlu0 %221
      %223 = vrot.lane.b32.xlu0 %v123, 120
      %v224 = vpop.permute.xlu0 %223
      %v225 = vsel %vm127, %v218, 0
      %v227 = vsel %vm127, %v220, 0
      %v229 = vsel %vm127, %v222, 0
      %v231 = vsel %vm127, %v224, 0
      %233 = vmatpush.xpose.msra.mxu0 0.0
      %234 = vmatpush.xpose.msra.mxu0 0.0
      %235 = vmatpush.xpose.msra.mxu0 0.0
      %236 = vmatpush.xpose.msra.mxu0 0.0
      %237 = vmatpush.xpose.msra.mxu0 0.0
      %238 = vmatpush.xpose.msra.mxu0 0.0
      %239 = vmatpush.xpose.msra.mxu0 0.0
      %240 = vmatpush.xpose.msra.mxu0 0.0
      %241 = vmatpush.xpose.msra.mxu0 0.0
      %242 = vmatpush.xpose.msra.mxu0 0.0
      %243 = vmatpush.xpose.msra.mxu0 0.0
      %244 = vmatpush.xpose.msra.mxu0 0.0
      %245 = vmatpush.xpose.msra.mxu0 0.0
      %246 = vmatpush.xpose.msra.mxu0 0.0
      %247 = vmatpush.xpose.msra.mxu0 %v231
      %248 = vmatpush.xpose.msra.mxu0 %v229
      %249 = vmatmul.f32.gmra.mxu0 %v225
      %v250 = vpop.f32.mrf.mxu0
      %v251 = vadd.f32 0.0, %v250
      %252 = vmatmul.f32.gmra.mxu0 %v227
      %v253 = vpop.f32.mrf.mxu0
      %v254 = vadd.f32 0.0, %v253
      %255 = vdwg.mxu0
      %v256 = vsel %vm163, %v251, -inf
      %257 = vmax.xlane.f32.xlu0 %v256
      %v258 = vpop.xlane.xlu0 %257
      %v259 = vsel %vm163, %v254, -inf
      %260 = vmax.xlane.f32.xlu0 %v259
      %v261 = vpop.xlane.xlu0 %260
      %v262 = vsub.f32 %v251, %v258
      %v263 = vsub.f32 %v254, %v261
      %v264 = vmul.f32 %v262, 1.442695
      %v265 = vpow.pop %v264
      %v266 = vmul.f32 %v263, 1.442695
      %v267 = vpow.pop %v266
      %v268 = vsel %vm163, %v265, 0.0
      %269 = vadd.xlane.f32.xlu0 %v268
      %v270 = vpop.xlane.xlu0 %269
      %v271 = vsel %vm163, %v267, 0.0
      %272 = vadd.xlane.f32.xlu0 %v271
      %v273 = vpop.xlane.xlu0 %272
      %276 = vrot.lane.b32.xlu0 %v125, 120
      %v277 = vpop.permute.xlu0 %276
      %278 = vrot.lane.b32.xlu0 %v126, 120
      %v279 = vpop.permute.xlu0 %278
      %v283 = vsel %vm163, %v265, 0
      %v286 = vsel %vm163, %v267, 0
      %288 = vmatpush.msra.mxu0 0.0
      %289 = vmatpush.msra.mxu0 0.0
      %290 = vmatpush.msra.mxu0 0.0
      %291 = vmatpush.msra.mxu0 0.0
      %292 = vmatpush.msra.mxu0 0.0
      %293 = vmatpush.msra.mxu0 0.0
      %294 = vmatpush.msra.mxu0 0.0
      %295 = vmatpush.msra.mxu0 0.0
      %296 = vmatpush.msra.mxu0 0.0
      %297 = vmatpush.msra.mxu0 0.0
      %298 = vmatpush.msra.mxu0 0.0
      %299 = vmatpush.msra.mxu0 0.0
      %300 = vmatpush.msra.mxu0 0.0
      %301 = vmatpush.msra.mxu0 0.0
      %302 = vmatpush.msra.mxu0 %v279
      %303 = vmatpush.msra.mxu0 %v277
      %304 = vmatmul.f32.gmra.mxu0 %v283
      %v305 = vpop.f32.mrf.mxu0
      %v306 = vadd.f32 0.0, %v305
      %307 = vmatmul.f32.gmra.mxu0 %v286
      %v308 = vpop.f32.mrf.mxu0
      %v309 = vadd.f32 0.0, %v308
      %310 = vdwg.mxu0
      %v311 = vrcp.pop %v270
      %v312 = vrcp.pop %v273
      %v313 = vmul.f32 %v306, %v311
      %v314 = vmul.f32 %v309, %v312
      %317 = vrot.lane.b32.xlu0 %v313, 8
      %v318 = vpop.permute.xlu0 %317
      %319 = vrot.lane.b32.xlu0 %v314, 8
      %v320 = vpop.permute.xlu0 %319
      %vm323 = vcmask 130112
      %324 = vst.msk [vmem:[%s116] sm:$0xff] %vm323, %v318
      %325 = vst.msk [vmem:[%s116 + $0x8] sm:$0xff] %vm323, %v320
      %326 = vrot.lane.b32.xlu0 %v119, 112
      %v327 = vpop.permute.xlu0 %326
      %328 = vrot.lane.b32.xlu0 %v120, 112
      %v329 = vpop.permute.xlu0 %328
      %330 = vrot.lane.b32.xlu0 %v122, 112
      %v331 = vpop.permute.xlu0 %330
      %332 = vrot.lane.b32.xlu0 %v123, 112
      %v333 = vpop.permute.xlu0 %332
      %v334 = vsel %vm127, %v327, 0
      %v336 = vsel %vm127, %v329, 0
      %v338 = vsel %vm127, %v331, 0
      %v340 = vsel %vm127, %v333, 0
      %342 = vmatpush.xpose.msra.mxu0 0.0
      %343 = vmatpush.xpose.msra.mxu0 0.0
      %344 = vmatpush.xpose.msra.mxu0 0.0
      %345 = vmatpush.xpose.msra.mxu0 0.0
      %346 = vmatpush.xpose.msra.mxu0 0.0
      %347 = vmatpush.xpose.msra.mxu0 0.0
      %348 = vmatpush.xpose.msra.mxu0 0.0
      %349 = vmatpush.xpose.msra.mxu0 0.0
      %350 = vmatpush.xpose.msra.mxu0 0.0
      %351 = vmatpush.xpose.msra.mxu0 0.0
      %352 = vmatpush.xpose.msra.mxu0 0.0
      %353 = vmatpush.xpose.msra.mxu0 0.0
      %354 = vmatpush.xpose.msra.mxu0 0.0
      %355 = vmatpush.xpose.msra.mxu0 0.0
      %356 = vmatpush.xpose.msra.mxu0 %v340
      %357 = vmatpush.xpose.msra.mxu0 %v338
      %358 = vmatmul.f32.gmra.mxu0 %v334
      %v359 = vpop.f32.mrf.mxu0
      %v360 = vadd.f32 0.0, %v359
      %361 = vmatmul.f32.gmra.mxu0 %v336
      %v362 = vpop.f32.mrf.mxu0
      %v363 = vadd.f32 0.0, %v362
      %364 = vdwg.mxu0
      %v365 = vsel %vm163, %v360, -inf
      %366 = vmax.xlane.f32.xlu0 %v365
      %v367 = vpop.xlane.xlu0 %366
      %v368 = vsel %vm163, %v363, -inf
      %369 = vmax.xlane.f32.xlu0 %v368
      %v370 = vpop.xlane.xlu0 %369
      %v371 = vsub.f32 %v360, %v367
      %v372 = vsub.f32 %v363, %v370
      %v373 = vmul.f32 %v371, 1.442695
      %v374 = vpow.pop %v373
      %v375 = vmul.f32 %v372, 1.442695
      %v376 = vpow.pop %v375
      %v377 = vsel %vm163, %v374, 0.0
      %378 = vadd.xlane.f32.xlu0 %v377
      %v379 = vpop.xlane.xlu0 %378
      %v380 = vsel %vm163, %v376, 0.0
      %381 = vadd.xlane.f32.xlu0 %v380
      %v382 = vpop.xlane.xlu0 %381
      %383 = vrot.lane.b32.xlu0 %v125, 112
      %v384 = vpop.permute.xlu0 %383
      %385 = vrot.lane.b32.xlu0 %v126, 112
      %v386 = vpop.permute.xlu0 %385
      %v390 = vsel %vm163, %v374, 0
      %v393 = vsel %vm163, %v376, 0
      %395 = vmatpush.msra.mxu0 0.0
      %396 = vmatpush.msra.mxu0 0.0
      %397 = vmatpush.msra.mxu0 0.0
      %398 = vmatpush.msra.mxu0 0.0
      %399 = vmatpush.msra.mxu0 0.0
      %400 = vmatpush.msra.mxu0 0.0
      %401 = vmatpush.msra.mxu0 0.0
      %402 = vmatpush.msra.mxu0 0.0
      %403 = vmatpush.msra.mxu0 0.0
      %404 = vmatpush.msra.mxu0 0.0
      %405 = vmatpush.msra.mxu0 0.0
      %406 = vmatpush.msra.mxu0 0.0
      %407 = vmatpush.msra.mxu0 0.0
      %408 = vmatpush.msra.mxu0 0.0
      %409 = vmatpush.msra.mxu0 %v386
      %410 = vmatpush.msra.mxu0 %v384
      %411 = vmatmul.f32.gmra.mxu0 %v390
      %v412 = vpop.f32.mrf.mxu0
      %v413 = vadd.f32 0.0, %v412
      %414 = vmatmul.f32.gmra.mxu0 %v393
      %v415 = vpop.f32.mrf.mxu0
      %v416 = vadd.f32 0.0, %v415
      %417 = vdwg.mxu0
      %v418 = vrcp.pop %v379
      %v419 = vrcp.pop %v382
      %v420 = vmul.f32 %v413, %v418
      %v421 = vmul.f32 %v416, %v419
      %424 = vrot.lane.b32.xlu0 %v420, 16
      %v425 = vpop.permute.xlu0 %424
      %426 = vrot.lane.b32.xlu0 %v421, 16
      %v427 = vpop.permute.xlu0 %426
      %vm430 = vcmask 195712
      %431 = vst.msk [vmem:[%s116] sm:$0xff] %vm430, %v425
      %432 = vst.msk [vmem:[%s116 + $0x8] sm:$0xff] %vm430, %v427
      %433 = vrot.lane.b32.xlu0 %v119, 104
      %v434 = vpop.permute.xlu0 %433
      %435 = vrot.lane.b32.xlu0 %v120, 104
      %v436 = vpop.permute.xlu0 %435
      %437 = vrot.lane.b32.xlu0 %v122, 104
      %v438 = vpop.permute.xlu0 %437
      %439 = vrot.lane.b32.xlu0 %v123, 104
      %v440 = vpop.permute.xlu0 %439
      %v441 = vsel %vm127, %v434, 0
      %v443 = vsel %vm127, %v436, 0
      %v445 = vsel %vm127, %v438, 0
      %v447 = vsel %vm127, %v440, 0
      %449 = vmatpush.xpose.msra.mxu0 0.0
      %450 = vmatpush.xpose.msra.mxu0 0.0
      %451 = vmatpush.xpose.msra.mxu0 0.0
      %452 = vmatpush.xpose.msra.mxu0 0.0
      %453 = vmatpush.xpose.msra.mxu0 0.0
      %454 = vmatpush.xpose.msra.mxu0 0.0
      %455 = vmatpush.xpose.msra.mxu0 0.0
      %456 = vmatpush.xpose.msra.mxu0 0.0
      %457 = vmatpush.xpose.msra.mxu0 0.0
      %458 = vmatpush.xpose.msra.mxu0 0.0
      %459 = vmatpush.xpose.msra.mxu0 0.0
      %460 = vmatpush.xpose.msra.mxu0 0.0
      %461 = vmatpush.xpose.msra.mxu0 0.0
      %462 = vmatpush.xpose.msra.mxu0 0.0
      %463 = vmatpush.xpose.msra.mxu0 %v447
      %464 = vmatpush.xpose.msra.mxu0 %v445
      %465 = vmatmul.f32.gmra.mxu0 %v441
      %v466 = vpop.f32.mrf.mxu0
      %v467 = vadd.f32 0.0, %v466
      %468 = vmatmul.f32.gmra.mxu0 %v443
      %v469 = vpop.f32.mrf.mxu0
      %v470 = vadd.f32 0.0, %v469
      %471 = vdwg.mxu0
      %v472 = vsel %vm163, %v467, -inf
      %473 = vmax.xlane.f32.xlu0 %v472
      %v474 = vpop.xlane.xlu0 %473
      %v475 = vsel %vm163, %v470, -inf
      %476 = vmax.xlane.f32.xlu0 %v475
      %v477 = vpop.xlane.xlu0 %476
      %v478 = vsub.f32 %v467, %v474
      %v479 = vsub.f32 %v470, %v477
      %v480 = vmul.f32 %v478, 1.442695
      %v481 = vpow.pop %v480
      %v482 = vmul.f32 %v479, 1.442695
      %v483 = vpow.pop %v482
      %v484 = vsel %vm163, %v481, 0.0
      %485 = vadd.xlane.f32.xlu0 %v484
      %v486 = vpop.xlane.xlu0 %485
      %v487 = vsel %vm163, %v483, 0.0
      %488 = vadd.xlane.f32.xlu0 %v487
      %v489 = vpop.xlane.xlu0 %488
      %490 = vrot.lane.b32.xlu0 %v125, 104
      %v491 = vpop.permute.xlu0 %490
      %492 = vrot.lane.b32.xlu0 %v126, 104
      %v493 = vpop.permute.xlu0 %492
      %v497 = vsel %vm163, %v481, 0
      %v500 = vsel %vm163, %v483, 0
      %502 = vmatpush.msra.mxu0 0.0
      %503 = vmatpush.msra.mxu0 0.0
      %504 = vmatpush.msra.mxu0 0.0
      %505 = vmatpush.msra.mxu0 0.0
      %506 = vmatpush.msra.mxu0 0.0
      %507 = vmatpush.msra.mxu0 0.0
      %508 = vmatpush.msra.mxu0 0.0
      %509 = vmatpush.msra.mxu0 0.0
      %510 = vmatpush.msra.mxu0 0.0
      %511 = vmatpush.msra.mxu0 0.0
      %512 = vmatpush.msra.mxu0 0.0
      %513 = vmatpush.msra.mxu0 0.0
      %514 = vmatpush.msra.mxu0 0.0
      %515 = vmatpush.msra.mxu0 0.0
      %516 = vmatpush.msra.mxu0 %v493
      %517 = vmatpush.msra.mxu0 %v491
      %518 = vmatmul.f32.gmra.mxu0 %v497
      %v519 = vpop.f32.mrf.mxu0
      %v520 = vadd.f32 0.0, %v519
      %521 = vmatmul.f32.gmra.mxu0 %v500
      %v522 = vpop.f32.mrf.mxu0
      %v523 = vadd.f32 0.0, %v522
      %524 = vdwg.mxu0
      %v525 = vrcp.pop %v486
      %v526 = vrcp.pop %v489
      %v527 = vmul.f32 %v520, %v525
      %v528 = vmul.f32 %v523, %v526
      %531 = vrot.lane.b32.xlu0 %v527, 24
      %v532 = vpop.permute.xlu0 %531
      %533 = vrot.lane.b32.xlu0 %v528, 24
      %v534 = vpop.permute.xlu0 %533
      %vm537 = vcmask 261312
      %538 = vst.msk [vmem:[%s116] sm:$0xff] %vm537, %v532
      %539 = vst.msk [vmem:[%s116 + $0x8] sm:$0xff] %vm537, %v534
      %p540 = scmp.lt.s32.totalorder %s12, 1
      %s541 = scalar_select %p540, %s12, 1
      %s542 = smul.addr %s541, 2
      %s543 = smul.addr %s542, 8
      %s544 = scalar_lea.vmem %s1, %s543
      // Predicated region
      $region25: #{fft_block_forward.4} parent=23 // pred_check
        %p545 = pneg %p56
      $region26: #{fft_block_forward.4} parent=23 // pred_check_branch
        %547 = sbr.rel (%p545) target = $region28
      $region27: #{fft_block_forward.4} parent=23 // pred_region
        _
      $region28: #{fft_block_forward.4} parent=23 // pred_fallthru
        _
    $region24: #{fft_block_forward.4} parent=5 // pred_fallthru
      _
    %p548 = scmp.le.s32.totalorder 2, %s7
    // Predicated region
    $region29: #{fft_block_forward.4} parent=5 // pred_check
      %p549 = pneg %p548
    $region30: #{fft_block_forward.4} parent=5 // pred_check_branch
      %551 = sbr.rel (%p549) target = $region32
    $region31: #{fft_block_forward.4} parent=5 // pred_region
      %s552 = ssub.s32 %s7, 2
      // Predicated region
      $region33: #{fft_block_forward.4} parent=31 // pred_check
        %p553 = pneg %p62
      $region34: #{fft_block_forward.4} parent=31 // pred_check_branch
        %555 = sbr.rel (%p553) target = $region36
      $region35: #{fft_block_forward.4} parent=31 // pred_region
        %p556 = scmp.lt.s32.totalorder %s13, 1
        %s557 = scalar_select %p556, %s13, 1
        %s558 = smul.addr %s557, 2
        %s559 = smul.addr %s558, 8
        %s560 = scalar_lea.vmem %s1, %s559
      $region36: #{fft_block_forward.4} parent=31 // pred_fallthru
        _
    $region32: #{fft_block_forward.4} parent=5 // pred_fallthru
      _
  $region6: #{fft_block_forward.4} parent=0 // loop_footer
    %s11 = sadd.s32 1, %s7
  $region7: #{fft_block_forward.4} parent=0 // loop_footer_branch
    %6 = sbr.rel target = $region3
  $region8: #{fft_block_forward.4} parent=0 // loop_exit
    _

// kernel: fft_block_forward.3
$region0: #{fft_block_forward.3}
  #allocation0 [shape = 'u32[]', space=smem, size = 0x4, offset = 0x4, fixed_abs, tag = 'smem constant byte address 0x4 - core index']
  #allocation1 [shape = 'u32[72,128]{1,0:T(1,128)}', space=vmem, size = 0x9000, scoped, tag = 'internal scratch']
  #allocation2 [shape = 'f32[16,96]{1,0:T(8,128)}', space=vmem, size = 0x2000, scoped, tag = 'scratch operand']
  %s0 = inlined_call_operand.vmem [shape: f32[2,16,32], index: 0, kind: input, shape index: {}]
  %s1 = inlined_call_operand.vmem [shape: f32[1,32], index: 1, kind: input, shape index: {}]
  %s2 = inlined_call_operand.vmem [shape: f32[1,32], index: 2, kind: input, shape index: {}]
  %s3 = inlined_call_operand.vmem [shape: f32[96,96], index: 3, kind: input, shape index: {}]
  %s4 = inlined_call_operand.vmem [shape: f32[96,1], index: 4, kind: input, shape index: {}]
  %s5 = inlined_call_operand.vmem [shape: f32[2,96,16], index: 5, kind: output, shape index: {}]
  %s6 = sld [smem:[#allocation0]]
  $region53: #{fft_block_forward.3} parent=0
    _
  %s8 = ssub.s32 1, %s6
  %s9 = scalar_select 0, %s8, %s6
  loop: start=0, step=1, limit=4
  $region2: #{fft_block_forward.3} parent=0 // loop_pre_header
    _
  $region3: #{fft_block_forward.3} parent=0 // loop_header
    %s11 = sphi 0, %s15
    %p12 = scmp.ge.s32.totalorder %s11, 4
    %s21 = sphi 0, %s23
    %s24 = sphi 0, %s21
    %s25 = sphi 0, %s24
    %s41 = sphi 0, %s25
    %s45 = sphi 0, %s45
    %s47 = sphi 0, %s45
    %s48 = sphi 0, %s47
    %s62 = sphi 0, %s48
    %s66 = sphi 0, %s66
    %s68 = sphi 0, %s66
    %s69 = sphi 0, %s68
    %s83 = sphi 0, %s69
    %s87 = sphi 0, %s87
    %s89 = sphi 0, %s87
    %s90 = sphi 0, %s89
    %s104 = sphi 0, %s90
    %s108 = sphi 0, %s108
    %s110 = sphi 0, %s108
    %s111 = sphi 0, %s110
    %s125 = sphi 0, %s111
    %s131 = sphi 0, %s133
    %s134 = sphi 0, %s131
    %s135 = sphi 0, %s134
    %s151 = sphi 0, %s135
  $region4: #{fft_block_forward.3} parent=0 // loop_header_branch
    %14 = sbr.rel (%p12) target = $region8
  $region5: #{fft_block_forward.3} parent=0 // loop_body
    %s16 = ssub.s32 %s11, 1
    %s17 = ssub.s32 %s11, 2
    %s18 = sadd.s32 %s11, 1
    %s19 = ssub.s32 %s11, %s18
    %p20 = scmp.eq.s32.totalorder %s19, 0
    %s22 = sadd.s32 %s21, 1
    %s23 = scalar_select %p20, %s21, %s22
    %p26 = pneg %p20
    %p27 = scmp.eq.s32.totalorder %s11, 1
    %p28 = por %p26, %p27
    %p29 = scmp.ne.s32.totalorder %s21, %s24
    %p30 = scmp.eq.s32.totalorder %s11, 0
    %p31 = por %p29, %p30
    %p32 = scmp.ne.s32.totalorder %s21, %s24
    %p33 = scmp.eq.s32.totalorder %s16, 1
    %p34 = por %p32, %p33
    %p35 = scmp.ne.s32.totalorder %s24, %s25
    %p36 = scmp.eq.s32.totalorder %s16, 0
    %p37 = por %p35, %p36
    %p38 = scmp.ne.s32.totalorder %s24, %s25
    %p39 = scmp.eq.s32.totalorder %s17, 1
    %p40 = por %p38, %p39
    %p42 = scmp.ne.s32.totalorder %s25, %s41
    %p43 = scmp.eq.s32.totalorder %s17, 0
    %p44 = por %p42, %p43
    %s46 = sadd.s32 %s45, 1
    %p49 = scmp.eq.s32.totalorder %s11, 1
    %p50 = scmp.ne.s32.totalorder %s45, %s47
    %p51 = scmp.eq.s32.totalorder %s11, 0
    %p52 = por %p50, %p51
    %p53 = scmp.ne.s32.totalorder %s45, %s47
    %p54 = scmp.eq.s32.totalorder %s16, 1
    %p55 = por %p53, %p54
    %p56 = scmp.ne.s32.totalorder %s47, %s48
    %p57 = scmp.eq.s32.totalorder %s16, 0
    %p58 = por %p56, %p57
    %p59 = scmp.ne.s32.totalorder %s47, %s48
    %p60 = scmp.eq.s32.totalorder %s17, 1
    %p61 = por %p59, %p60
    %p63 = scmp.ne.s32.totalorder %s48, %s62
    %p64 = scmp.eq.s32.totalorder %s17, 0
    %p65 = por %p63, %p64
    %s67 = sadd.s32 %s66, 1
    %p70 = scmp.eq.s32.totalorder %s11, 1
    %p71 = scmp.ne.s32.totalorder %s66, %s68
    %p72 = scmp.eq.s32.totalorder %s11, 0
    %p73 = por %p71, %p72
    %p74 = scmp.ne.s32.totalorder %s66, %s68
    %p75 = scmp.eq.s32.totalorder %s16, 1
    %p76 = por %p74, %p75
    %p77 = scmp.ne.s32.totalorder %s68, %s69
    %p78 = scmp.eq.s32.totalorder %s16, 0
    %p79 = por %p77, %p78
    %p80 = scmp.ne.s32.totalorder %s68, %s69
    %p81 = scmp.eq.s32.totalorder %s17, 1
    %p82 = por %p80, %p81
    %p84 = scmp.ne.s32.totalorder %s69, %s83
    %p85 = scmp.eq.s32.totalorder %s17, 0
    %p86 = por %p84, %p85
    %s88 = sadd.s32 %s87, 1
    %p91 = scmp.eq.s32.totalorder %s11, 1
    %p92 = scmp.ne.s32.totalorder %s87, %s89
    %p93 = scmp.eq.s32.totalorder %s11, 0
    %p94 = por %p92, %p93
    %p95 = scmp.ne.s32.totalorder %s87, %s89
    %p96 = scmp.eq.s32.totalorder %s16, 1
    %p97 = por %p95, %p96
    %p98 = scmp.ne.s32.totalorder %s89, %s90
    %p99 = scmp.eq.s32.totalorder %s16, 0
    %p100 = por %p98, %p99
    %p101 = scmp.ne.s32.totalorder %s89, %s90
    %p102 = scmp.eq.s32.totalorder %s17, 1
    %p103 = por %p101, %p102
    %p105 = scmp.ne.s32.totalorder %s90, %s104
    %p106 = scmp.eq.s32.totalorder %s17, 0
    %p107 = por %p105, %p106
    %s109 = sadd.s32 %s108, 1
    %p112 = scmp.eq.s32.totalorder %s11, 1
    %p113 = scmp.ne.s32.totalorder %s108, %s110
    %p114 = scmp.eq.s32.totalorder %s11, 0
    %p115 = por %p113, %p114
    %p116 = scmp.ne.s32.totalorder %s108, %s110
    %p117 = scmp.eq.s32.totalorder %s16, 1
    %p118 = por %p116, %p117
    %p119 = scmp.ne.s32.totalorder %s110, %s111
    %p120 = scmp.eq.s32.totalorder %s16, 0
    %p121 = por %p119, %p120
    %p122 = scmp.ne.s32.totalorder %s110, %s111
    %p123 = scmp.eq.s32.totalorder %s17, 1
    %p124 = por %p122, %p123
    %p126 = scmp.ne.s32.totalorder %s111, %s125
    %p127 = scmp.eq.s32.totalorder %s17, 0
    %p128 = por %p126, %p127
    %s129 = ssub.s32 %s11, %s18
    %p130 = scmp.eq.s32.totalorder %s129, 0
    %s132 = sadd.s32 %s131, 1
    %s133 = scalar_select %p130, %s131, %s132
    %p136 = pneg %p130
    %p137 = scmp.eq.s32.totalorder %s11, 1
    %p138 = por %p136, %p137
    %p139 = scmp.ne.s32.totalorder %s131, %s134
    %p140 = scmp.eq.s32.totalorder %s11, 0
    %p141 = por %p139, %p140
    %p142 = scmp.ne.s32.totalorder %s131, %s134
    %p143 = scmp.eq.s32.totalorder %s16, 1
    %p144 = por %p142, %p143
    %p145 = scmp.ne.s32.totalorder %s134, %s135
    %p146 = scmp.eq.s32.totalorder %s16, 0
    %p147 = por %p145, %p146
    %p148 = scmp.ne.s32.totalorder %s134, %s135
    %p149 = scmp.eq.s32.totalorder %s17, 1
    %p150 = por %p148, %p149
    %p152 = scmp.ne.s32.totalorder %s135, %s151
    %p153 = scmp.eq.s32.totalorder %s17, 0
    %p154 = por %p152, %p153
    %p155 = scmp.le.s32.totalorder 1, %s11
    %p156 = scmp.lt.s32.totalorder %s11, 3
    %p157 = pnand %p155, %p156
    %p158 = pneg %p157
    // Predicated region
    $region9: #{fft_block_forward.3} parent=5 // pred_check
      _
    $region10: #{fft_block_forward.3} parent=5 // pred_check_branch
      %160 = sbr.rel (%p157) target = $region12
    $region11: #{fft_block_forward.3} parent=5 // pred_region
      %s161 = ssub.s32 %s11, 1
      // Predicated region
      $region13: #{fft_block_forward.3} parent=11 // pred_check
        %p162 = pneg %p58
      $region14: #{fft_block_forward.3} parent=11 // pred_check_branch
        %164 = sbr.rel (%p162) target = $region16
      $region15: #{fft_block_forward.3} parent=11 // pred_region
        _
      $region16: #{fft_block_forward.3} parent=11 // pred_fallthru
        _
      // Predicated region
      $region17: #{fft_block_forward.3} parent=11 // pred_check
        %p165 = pneg %p79
      $region18: #{fft_block_forward.3} parent=11 // pred_check_branch
        %167 = sbr.rel (%p165) target = $region20
      $region19: #{fft_block_forward.3} parent=11 // pred_region
        _
      $region20: #{fft_block_forward.3} parent=11 // pred_fallthru
        _
      // Predicated region
      $region21: #{fft_block_forward.3} parent=11 // pred_check
        %p168 = pneg %p100
      $region22: #{fft_block_forward.3} parent=11 // pred_check_branch
        %170 = sbr.rel (%p168) target = $region24
      $region23: #{fft_block_forward.3} parent=11 // pred_region
        _
      $region24: #{fft_block_forward.3} parent=11 // pred_fallthru
        _
      // Predicated region
      $region25: #{fft_block_forward.3} parent=11 // pred_check
        %p171 = pneg %p121
      $region26: #{fft_block_forward.3} parent=11 // pred_check_branch
        %173 = sbr.rel (%p171) target = $region28
      $region27: #{fft_block_forward.3} parent=11 // pred_region
        _
      $region28: #{fft_block_forward.3} parent=11 // pred_fallthru
        _
    $region12: #{fft_block_forward.3} parent=5 // pred_fallthru
      _
    %p174 = scmp.lt.s32.totalorder %s11, 2
    // Predicated region
    $region29: #{fft_block_forward.3} parent=5 // pred_check
      %p175 = pneg %p174
    $region30: #{fft_block_forward.3} parent=5 // pred_check_branch
      %177 = sbr.rel (%p175) target = $region32
    $region31: #{fft_block_forward.3} parent=5 // pred_region
      // Predicated region
      $region33: #{fft_block_forward.3} parent=31 // pred_check
        %p178 = pneg %p31
      $region34: #{fft_block_forward.3} parent=31 // pred_check_branch
        %180 = sbr.rel (%p178) target = $region36
      $region35: #{fft_block_forward.3} parent=31 // pred_region
        %p181 = scmp.lt.s32.totalorder %s11, 1
        %s182 = scalar_select %p181, %s11, 1
        %s183 = smul.addr %s182, 2
        %s184 = smul.addr %s183, 8
        %s185 = scalar_lea.vmem %s0, %s184
      $region36: #{fft_block_forward.3} parent=31 // pred_fallthru
        _
    $region32: #{fft_block_forward.3} parent=5 // pred_fallthru
      _
    %p186 = scmp.le.s32.totalorder 1, %s11
    %p187 = scmp.lt.s32.totalorder %s11, 3
    %p188 = pnand %p186, %p187
    %p189 = pneg %p188
    // Predicated region
    $region37: #{fft_block_forward.3} parent=5 // pred_check
      _
    $region38: #{fft_block_forward.3} parent=5 // pred_check_branch
      %191 = sbr.rel (%p188) target = $region40
    $region39: #{fft_block_forward.3} parent=5 // pred_region
      %s192 = ssub.s32 %s11, 1
      %p193 = scmp.lt.s32.totalorder %s16, 1
      %s194 = scalar_select %p193, %s16, 1
      %s195 = smul.addr %s194, 2
      %s196 = smul.addr %s195, 8
      %s197 = scalar_lea.vmem %s0, %s196
      %p198 = pneg %p37
      %p199 = pneg %p34
      %p200 = pneg %p58
      %p201 = pneg %p55
      %p202 = pneg %p79
      %p203 = pneg %p76
      %p204 = pneg %p100
      %p205 = pneg %p97
      %p206 = pneg %p121
      %p207 = pneg %p118
      %p208 = pneg %p147
      %p209 = pneg %p144
      %p210 = scmp.lt.s32.totalorder %s16, 1
      %s211 = scalar_select %p210, %s16, 1
      %s212 = smul.addr %s211, 12
      %s213 = smul.addr %s212, 8
      %s214 = scalar_lea.vmem %s5, %s213
      %p215 = scmp.lt.s32.totalorder %s16, 1
      %s216 = scalar_select %p215, %s16, 1
      %s217 = smul.addr %s216, 2
      %s218 = smul.addr %s217, 8
      %s219 = scalar_lea.vmem %s0, %s218
      %p220 = scmp.lt.s32.totalorder %s16, 1
      %s221 = scalar_select %p220, %s16, 1
      %s222 = smul.addr %s221, 12
      %s223 = smul.addr %s222, 8
      %s224 = scalar_lea.vmem %s5, %s223
      %v225 = vld [vmem:[%s219] sm:$0xff]
      %v226 = vld [vmem:[%s219 + $0x8] sm:$0xff]
      %v227 = vld [vmem:[%s1] sm:$0x1]
      %v228 = vld [vmem:[%s2] sm:$0x1]
      %vm229 = vcmask 261120
      %v230 = vsel %vm229, %v225, 0.0
      %231 = vadd.xlane.f32.xlu0 %v230
      %v232 = vpop.xlane.xlu0 %231
      %v233 = vsel %vm229, %v226, 0.0
      %234 = vadd.xlane.f32.xlu0 %v233
      %v235 = vpop.xlane.xlu0 %234
      %v236 = vrcp.pop 32.0
      %v237 = vmul.f32 32.0, %v236
      %v238 = vsub.f32 1.0, %v237
      %v239 = vmul.f32 %v236, %v238
      %v240 = vadd.f32 %v236, %v239
      %vm241 = vweird.f32 %v236
      %v242 = vsel %vm241, %v236, %v240
      %v243 = vmul.f32 %v232, %v242
      %v244 = vmul.f32 %v235, %v242
      %v245 = vsub.f32 %v225, %v243
      %v246 = vsub.f32 %v226, %v244
      %v247 = vmul.f32 %v245, %v245
      %v248 = vmul.f32 %v246, %v246
      %v249 = vsel %vm229, %v247, 0.0
      %250 = vadd.xlane.f32.xlu0 %v249
      %v251 = vpop.xlane.xlu0 %250
      %v252 = vsel %vm229, %v248, 0.0
      %253 = vadd.xlane.f32.xlu0 %v252
      %v254 = vpop.xlane.xlu0 %253
      %v255 = vmul.f32 %v251, %v242
      %v256 = vmul.f32 %v254, %v242
      %v257 = vadd.f32 %v255, 1e-05
      %v258 = vadd.f32 %v256, 1e-05
      %v259 = vrsqrt.pop %v257
      %v260 = vmul.f32 %v259, %v257
      %v261 = vmul.f32 %v260, %v259
      %v262 = vmul.f32 0.5, %v261
      %v263 = vsub.f32 1.5, %v262
      %v264 = vmul.f32 %v259, %v263
      %vm265 = vweird.f32 %v257
      %vm266 = vweird.f32 %v259
      %vm267 = vmor %vm265, %vm266
      %v268 = vsel %vm267, %v259, %v264
      %v269 = vrsqrt.pop %v258
      %v270 = vmul.f32 %v269, %v258
      %v271 = vmul.f32 %v270, %v269
      %v272 = vmul.f32 0.5, %v271
      %v273 = vsub.f32 1.5, %v272
      %v274 = vmul.f32 %v269, %v273
      %vm275 = vweird.f32 %v258
      %vm276 = vweird.f32 %v269
      %vm277 = vmor %vm275, %vm276
      %v278 = vsel %vm277, %v269, %v274
      %v279 = vmul.f32 %v245, %v268
      %v280 = vmul.f32 %v246, %v278
      %v282 = vperm.slane %v227, 0
      %v284 = vmul.f32 %v279, %v282
      %v285 = vmul.f32 %v280, %v282
      %v287 = vperm.slane %v228, 0
      %v289 = vadd.f32 %v284, %v287
      %v290 = vadd.f32 %v285, %v287
      %293 = vrot.lane.b32.xlu0 %v289, 32
      %v294 = vpop.permute.xlu0 %293
      %295 = vrot.lane.b32.xlu0 %v290, 32
      %v296 = vpop.permute.xlu0 %295
      %vm299 = vcmask 523520
      %300 = vst.msk [vmem:[#allocation2] sm:$0xff] %vm299, %v294
      %301 = vst.msk [vmem:[#allocation2 + $0x8] sm:$0xff] %vm299, %v296
      %302 = vst.msk [vmem:[#allocation2 + $0x1] sm:$0xff] %vm229, %v289
      %vm303 = vcmask 260096
      %304 = vst.msk [vmem:[#allocation2 + $0x9] sm:$0x7f] %vm303, %v290
      %vm305 = vcmask 253952
      %306 = vst.msk [vmem:[#allocation2] sm:$0x1] %vm305, 0.0
      %307 = vrot.lane.b32.xlu0 %v289, 64
      %v308 = vpop.permute.xlu0 %307
      %309 = vrot.lane.b32.xlu0 %v290, 64
      %v310 = vpop.permute.xlu0 %309
      %vm313 = vcmask 785921
      %314 = vst.msk [vmem:[#allocation2 - $0x1] sm:$0xfe] %vm313, %v308
      %vm315 = vcmask 785920
      %316 = vst.msk [vmem:[#allocation2 + $0x7] sm:$0xff] %vm315, %v310
      %vm317 = vcmask 778752
      %318 = vst.msk [vmem:[#allocation2 + $0xf] sm:$0x1] %vm317, 0.0
      %v319 = vld [vmem:[%s3] sm:$0xff]
      %v320 = vld [vmem:[%s3 + $0x8] sm:$0xff]
      %v321 = vld [vmem:[%s3 + $0x10] sm:$0xff]
      %v322 = vld [vmem:[%s3 + $0x18] sm:$0xff]
      %v323 = vld [vmem:[%s3 + $0x20] sm:$0xff]
      %v324 = vld [vmem:[%s3 + $0x28] sm:$0xff]
      %v325 = vld [vmem:[%s3 + $0x30] sm:$0xff]
      %v326 = vld [vmem:[%s3 + $0x38] sm:$0xff]
      %v327 = vld [vmem:[%s3 + $0x40] sm:$0xff]
      %v328 = vld [vmem:[%s3 + $0x48] sm:$0xff]
      %v329 = vld [vmem:[%s3 + $0x50] sm:$0xff]
      %v330 = vld [vmem:[%s3 + $0x58] sm:$0xff]
      %v331 = vld [vmem:[#allocation2] sm:$0xff]
      %v332 = vld [vmem:[#allocation2 + $0x8] sm:$0xff]
      %v333 = vld [vmem:[%s4] sm:$0xff]
      %v334 = vld [vmem:[%s4 + $0x8] sm:$0xff]
      %v335 = vld [vmem:[%s4 + $0x10] sm:$0xff]
      %v336 = vld [vmem:[%s4 + $0x18] sm:$0xff]
      %v337 = vld [vmem:[%s4 + $0x20] sm:$0xff]
      %v338 = vld [vmem:[%s4 + $0x28] sm:$0xff]
      %v339 = vld [vmem:[%s4 + $0x30] sm:$0xff]
      %v340 = vld [vmem:[%s4 + $0x38] sm:$0xff]
      %v341 = vld [vmem:[%s4 + $0x40] sm:$0xff]
      %v342 = vld [vmem:[%s4 + $0x48] sm:$0xff]
      %v343 = vld [vmem:[%s4 + $0x50] sm:$0xff]
      %v344 = vld [vmem:[%s4 + $0x58] sm:$0xff]
      %346 = vset.pattern.permute.xlu0 0
      %347 = vperm.xlu0 %346, %v333
      %v348 = vpop.permute.xlu0 %347
      %351 = vset.pattern.permute.xlu0 0
      %352 = vperm.xlu0 %351, %v334
      %v353 = vpop.permute.xlu0 %352
      %356 = vset.pattern.permute.xlu0 0
      %357 = vperm.xlu0 %356, %v335
      %v358 = vpop.permute.xlu0 %357
      %361 = vset.pattern.permute.xlu0 0
      %362 = vperm.xlu0 %361, %v336
      %v363 = vpop.permute.xlu0 %362
      %366 = vset.pattern.permute.xlu0 0
      %367 = vperm.xlu0 %366, %v337
      %v368 = vpop.permute.xlu0 %367
      %371 = vset.pattern.permute.xlu0 0
      %372 = vperm.xlu0 %371, %v338
      %v373 = vpop.permute.xlu0 %372
      %376 = vset.pattern.permute.xlu0 0
      %377 = vperm.xlu0 %376, %v339
      %v378 = vpop.permute.xlu0 %377
      %381 = vset.pattern.permute.xlu0 0
      %382 = vperm.xlu0 %381, %v340
      %v383 = vpop.permute.xlu0 %382
      %386 = vset.pattern.permute.xlu0 0
      %387 = vperm.xlu0 %386, %v341
      %v388 = vpop.permute.xlu0 %387
      %391 = vset.pattern.permute.xlu0 0
      %392 = vperm.xlu0 %391, %v342
      %v393 = vpop.permute.xlu0 %392
      %396 = vset.pattern.permute.xlu0 0
      %397 = vperm.xlu0 %396, %v343
      %v398 = vpop.permute.xlu0 %397
      %401 = vset.pattern.permute.xlu0 0
      %402 = vperm.xlu0 %401, %v344
      %v403 = vpop.permute.xlu0 %402
      %vm405 = vcmask 785408
      %v407 = vsel %vm405, %v319, 0
      %v410 = vsel %vm405, %v320, 0
      %v413 = vsel %vm405, %v321, 0
      %v416 = vsel %vm405, %v322, 0
      %v419 = vsel %vm405, %v323, 0
      %v422 = vsel %vm405, %v324, 0
      %v425 = vsel %vm405, %v325, 0
      %v428 = vsel %vm405, %v326, 0
      %v431 = vsel %vm405, %v327, 0
      %v434 = vsel %vm405, %v328, 0
      %v437 = vsel %vm405, %v329, 0
      %v440 = vsel %vm405, %v330, 0
      %v443 = vsel %vm405, %v331, 0
      %v446 = vsel %vm405, %v332, 0
      %448 = vmatpush.xpose.msra.mxu0 0.0
      %449 = vmatpush.xpose.msra.mxu0 0.0
      %450 = vmatpush.xpose.msra.mxu0 0.0
      %451 = vmatpush.xpose.msra.mxu0 0.0
      %452 = vmatpush.xpose.msra.mxu0 0.0
      %453 = vmatpush.xpose.msra.mxu0 0.0
      %454 = vmatpush.xpose.msra.mxu0 0.0
      %455 = vmatpush.xpose.msra.mxu0 0.0
      %456 = vmatpush.xpose.msra.mxu0 0.0
      %457 = vmatpush.xpose.msra.mxu0 0.0
      %458 = vmatpush.xpose.msra.mxu0 0.0
      %459 = vmatpush.xpose.msra.mxu0 0.0
      %460 = vmatpush.xpose.msra.mxu0 0.0
      %461 = vmatpush.xpose.msra.mxu0 0.0
      %462 = vmatpush.xpose.msra.mxu0 %v446
      %463 = vmatpush.xpose.msra.mxu0 %v443
      %464 = vmatmul.f32.gmra.mxu0 %v407
      %v465 = vpop.f32.mrf.mxu0
      %v466 = vadd.f32 %v348, %v465
      %467 = vmatmul.f32.gmra.mxu0 %v410
      %v468 = vpop.f32.mrf.mxu0
      %v469 = vadd.f32 %v353, %v468
      %470 = vmatmul.f32.gmra.mxu0 %v413
      %v471 = vpop.f32.mrf.mxu0
      %v472 = vadd.f32 %v358, %v471
      %473 = vmatmul.f32.gmra.mxu0 %v416
      %v474 = vpop.f32.mrf.mxu0
      %v475 = vadd.f32 %v363, %v474
      %476 = vmatmul.f32.gmra.mxu0 %v419
      %v477 = vpop.f32.mrf.mxu0
      %v478 = vadd.f32 %v368, %v477
      %479 = vmatmul.f32.gmra.mxu0 %v422
      %v480 = vpop.f32.mrf.mxu0
      %v481 = vadd.f32 %v373, %v480
      %482 = vmatmul.f32.gmra.mxu0 %v425
      %v483 = vpop.f32.mrf.mxu0
      %v484 = vadd.f32 %v378, %v483
      %485 = vmatmul.f32.gmra.mxu0 %v428
      %v486 = vpop.f32.mrf.mxu0
      %v487 = vadd.f32 %v383, %v486
      %488 = vmatmul.f32.gmra.mxu0 %v431
      %v489 = vpop.f32.mrf.mxu0
      %v490 = vadd.f32 %v388, %v489
      %491 = vmatmul.f32.gmra.mxu0 %v434
      %v492 = vpop.f32.mrf.mxu0
      %v493 = vadd.f32 %v393, %v492
      %494 = vmatmul.f32.gmra.mxu0 %v437
      %v495 = vpop.f32.mrf.mxu0
      %v496 = vadd.f32 %v398, %v495
      %497 = vmatmul.f32.gmra.mxu0 %v440
      %v498 = vpop.f32.mrf.mxu0
      %v499 = vadd.f32 %v403, %v498
      %500 = vdwg.mxu0
      %vm501 = vcmask 130048
      %502 = vst.msk [vmem:[%s224] sm:$0xff] %vm501, %v466
      %503 = vst.msk [vmem:[%s224 + $0x8] sm:$0xff] %vm501, %v469
      %504 = vst.msk [vmem:[%s224 + $0x10] sm:$0xff] %vm501, %v472
      %505 = vst.msk [vmem:[%s224 + $0x18] sm:$0xff] %vm501, %v475
      %506 = vst.msk [vmem:[%s224 + $0x20] sm:$0xff] %vm501, %v478
      %507 = vst.msk [vmem:[%s224 + $0x28] sm:$0xff] %vm501, %v481
      %508 = vst.msk [vmem:[%s224 + $0x30] sm:$0xff] %vm501, %v484
      %509 = vst.msk [vmem:[%s224 + $0x38] sm:$0xff] %vm501, %v487
      %510 = vst.msk [vmem:[%s224 + $0x40] sm:$0xff] %vm501, %v490
      %511 = vst.msk [vmem:[%s224 + $0x48] sm:$0xff] %vm501, %v493
      %512 = vst.msk [vmem:[%s224 + $0x50] sm:$0xff] %vm501, %v496
      %513 = vst.msk [vmem:[%s224 + $0x58] sm:$0xff] %vm501, %v499
      %p514 = scmp.lt.s32.totalorder %s16, 1
      %s515 = scalar_select %p514, %s16, 1
      %s516 = smul.addr %s515, 12
      %s517 = smul.addr %s516, 8
      %s518 = scalar_lea.vmem %s5, %s517
      // Predicated region
      $region41: #{fft_block_forward.3} parent=39 // pred_check
        %p519 = pneg %p144
      $region42: #{fft_block_forward.3} parent=39 // pred_check_branch
        %521 = sbr.rel (%p519) target = $region44
      $region43: #{fft_block_forward.3} parent=39 // pred_region
        _
      $region44: #{fft_block_forward.3} parent=39 // pred_fallthru
        _
    $region40: #{fft_block_forward.3} parent=5 // pred_fallthru
      _
    %p522 = scmp.le.s32.totalorder 2, %s11
    // Predicated region
    $region45: #{fft_block_forward.3} parent=5 // pred_check
      %p523 = pneg %p522
    $region46: #{fft_block_forward.3} parent=5 // pred_check_branch
      %525 = sbr.rel (%p523) target = $region48
    $region47: #{fft_block_forward.3} parent=5 // pred_region
      %s526 = ssub.s32 %s11, 2
      // Predicated region
      $region49: #{fft_block_forward.3} parent=47 // pred_check
        %p527 = pneg %p150
      $region50: #{fft_block_forward.3} parent=47 // pred_check_branch
        %529 = sbr.rel (%p527) target = $region52
      $region51: #{fft_block_forward.3} parent=47 // pred_region
        %p530 = scmp.lt.s32.totalorder %s17, 1
        %s531 = scalar_select %p530, %s17, 1
        %s532 = smul.addr %s531, 12
        %s533 = smul.addr %s532, 8
        %s534 = scalar_lea.vmem %s5, %s533
      $region52: #{fft_block_forward.3} parent=47 // pred_fallthru
        _
    $region48: #{fft_block_forward.3} parent=5 // pred_fallthru
      _
  $region6: #{fft_block_forward.3} parent=0 // loop_footer
    %s15 = sadd.s32 1, %s11
  $region7: #{fft_block_forward.3} parent=0 // loop_footer_branch
    %10 = sbr.rel target = $region3
  $region8: #{fft_block_forward.3} parent=0 // loop_exit
    _

// kernel: fft_block_forward.5
$region0: #{fft_block_forward.5}
  #allocation0 [shape = 'u32[]', space=smem, size = 0x4, offset = 0x4, fixed_abs, tag = 'smem constant byte address 0x4 - core index']
  #allocation1 [shape = 'u32[72,128]{1,0:T(1,128)}', space=vmem, size = 0x9000, scoped, tag = 'internal scratch']
  #allocation2 [shape = 'f32[16,96]{1,0:T(8,128)}', space=vmem, size = 0x2000, scoped, tag = 'scratch operand']
  #allocation3 [shape = 'f32[16,192]{1,0:T(8,128)}', space=vmem, size = 0x4000, scoped, tag = 'scratch operand']
  %s0 = inlined_call_operand.vmem [shape: f32[2,32,16], index: 0, kind: input, shape index: {}]
  %s1 = inlined_call_operand.vmem [shape: f32[2,16,32], index: 1, kind: input, shape index: {}]
  %s2 = inlined_call_operand.vmem [shape: f32[1,32], index: 2, kind: input, shape index: {}]
  %s3 = inlined_call_operand.vmem [shape: f32[1,32], index: 3, kind: input, shape index: {}]
  %s4 = inlined_call_operand.vmem [shape: f32[96,32], index: 4, kind: input, shape index: {}]
  %s5 = inlined_call_operand.vmem [shape: f32[1,32], index: 5, kind: input, shape index: {}]
  %s6 = inlined_call_operand.vmem [shape: f32[96,64], index: 6, kind: input, shape index: {}]
  %s7 = inlined_call_operand.vmem [shape: f32[1,64], index: 7, kind: input, shape index: {}]
  %s8 = inlined_call_operand.vmem [shape: f32[192,32], index: 8, kind: input, shape index: {}]
  %s9 = inlined_call_operand.vmem [shape: f32[1,32], index: 9, kind: input, shape index: {}]
  %s10 = inlined_call_operand.hbm [shape: f32[2,16,32], index: 10, kind: output, shape index: {}]
  %s11 = sld [smem:[#allocation0]]
  $region73: #{fft_block_forward.5} parent=0
    _
  %s13 = ssub.s32 1, %s11
  %s14 = scalar_select 0, %s13, %s11
  $region1: #{fft_block_forward.5} parent=0
    #allocation4 [shape = 'u8[16384]{0}', space=vmem, size = 0x4000, scoped, tag = 'output window, operand 0']
    #allocation5 [shape = 's32[2]{0}', space=sflag, size = 0x8, scoped, tag = 'scoped memory for fft_block_forward.5']
    %15 = vsyncpa [#allocation5], 0
    %s16 = scalar_lea.sflag [#allocation5], 1
    %17 = vsyncpa %s16, 0
    loop: start=0, step=1, limit=4
    $region2: #{fft_block_forward.5} parent=1 // loop_pre_header
      _
    $region3: #{fft_block_forward.5} parent=1 // loop_header
      %s19 = sphi 0, %s23
      %p20 = scmp.ge.s32.totalorder %s19, 4
      %s29 = sphi 0, %s31
      %s32 = sphi 0, %s29
      %s33 = sphi 0, %s32
      %s49 = sphi 0, %s33
      %s55 = sphi 0, %s57
      %s58 = sphi 0, %s55
      %s59 = sphi 0, %s58
      %s75 = sphi 0, %s59
      %s79 = sphi 0, %s79
      %s81 = sphi 0, %s79
      %s82 = sphi 0, %s81
      %s96 = sphi 0, %s82
      %s100 = sphi 0, %s100
      %s102 = sphi 0, %s100
      %s103 = sphi 0, %s102
      %s117 = sphi 0, %s103
      %s121 = sphi 0, %s121
      %s123 = sphi 0, %s121
      %s124 = sphi 0, %s123
      %s138 = sphi 0, %s124
      %s142 = sphi 0, %s142
      %s144 = sphi 0, %s142
      %s145 = sphi 0, %s144
      %s159 = sphi 0, %s145
      %s163 = sphi 0, %s163
      %s165 = sphi 0, %s163
      %s166 = sphi 0, %s165
      %s180 = sphi 0, %s166
      %s184 = sphi 0, %s184
      %s186 = sphi 0, %s184
      %s187 = sphi 0, %s186
      %s201 = sphi 0, %s187
      %s205 = sphi 0, %s205
      %s207 = sphi 0, %s205
      %s208 = sphi 0, %s207
      %s222 = sphi 0, %s208
      %s226 = sphi 0, %s226
      %s228 = sphi 0, %s226
      %s229 = sphi 0, %s228
      %s243 = sphi 0, %s229
      %s249 = sphi 0, %s251
      %s252 = sphi 0, %s249
      %s253 = sphi 0, %s252
      %s269 = sphi 0, %s253
    $region4: #{fft_block_forward.5} parent=1 // loop_header_branch
      %22 = sbr.rel (%p20) target = $region8
    $region5: #{fft_block_forward.5} parent=1 // loop_body
      %s24 = ssub.s32 %s19, 1
      %s25 = ssub.s32 %s19, 2
      %s26 = sadd.s32 %s19, 1
      %s27 = ssub.s32 %s19, %s26
      %p28 = scmp.eq.s32.totalorder %s27, 0
      %s30 = sadd.s32 %s29, 1
      %s31 = scalar_select %p28, %s29, %s30
      %p34 = pneg %p28
      %p35 = scmp.eq.s32.totalorder %s19, 1
      %p36 = por %p34, %p35
      %p37 = scmp.ne.s32.totalorder %s29, %s32
      %p38 = scmp.eq.s32.totalorder %s19, 0
      %p39 = por %p37, %p38
      %p40 = scmp.ne.s32.totalorder %s29, %s32
      %p41 = scmp.eq.s32.totalorder %s24, 1
      %p42 = por %p40, %p41
      %p43 = scmp.ne.s32.totalorder %s32, %s33
      %p44 = scmp.eq.s32.totalorder %s24, 0
      %p45 = por %p43, %p44
      %p46 = scmp.ne.s32.totalorder %s32, %s33
      %p47 = scmp.eq.s32.totalorder %s25, 1
      %p48 = por %p46, %p47
      %p50 = scmp.ne.s32.totalorder %s33, %s49
      %p51 = scmp.eq.s32.totalorder %s25, 0
      %p52 = por %p50, %p51
      %s53 = ssub.s32 %s19, %s26
      %p54 = scmp.eq.s32.totalorder %s53, 0
      %s56 = sadd.s32 %s55, 1
      %s57 = scalar_select %p54, %s55, %s56
      %p60 = pneg %p54
      %p61 = scmp.eq.s32.totalorder %s19, 1
      %p62 = por %p60, %p61
      %p63 = scmp.ne.s32.totalorder %s55, %s58
      %p64 = scmp.eq.s32.totalorder %s19, 0
      %p65 = por %p63, %p64
      %p66 = scmp.ne.s32.totalorder %s55, %s58
      %p67 = scmp.eq.s32.totalorder %s24, 1
      %p68 = por %p66, %p67
      %p69 = scmp.ne.s32.totalorder %s58, %s59
      %p70 = scmp.eq.s32.totalorder %s24, 0
      %p71 = por %p69, %p70
      %p72 = scmp.ne.s32.totalorder %s58, %s59
      %p73 = scmp.eq.s32.totalorder %s25, 1
      %p74 = por %p72, %p73
      %p76 = scmp.ne.s32.totalorder %s59, %s75
      %p77 = scmp.eq.s32.totalorder %s25, 0
      %p78 = por %p76, %p77
      %s80 = sadd.s32 %s79, 1
      %p83 = scmp.eq.s32.totalorder %s19, 1
      %p84 = scmp.ne.s32.totalorder %s79, %s81
      %p85 = scmp.eq.s32.totalorder %s19, 0
      %p86 = por %p84, %p85
      %p87 = scmp.ne.s32.totalorder %s79, %s81
      %p88 = scmp.eq.s32.totalorder %s24, 1
      %p89 = por %p87, %p88
      %p90 = scmp.ne.s32.totalorder %s81, %s82
      %p91 = scmp.eq.s32.totalorder %s24, 0
      %p92 = por %p90, %p91
      %p93 = scmp.ne.s32.totalorder %s81, %s82
      %p94 = scmp.eq.s32.totalorder %s25, 1
      %p95 = por %p93, %p94
      %p97 = scmp.ne.s32.totalorder %s82, %s96
      %p98 = scmp.eq.s32.totalorder %s25, 0
      %p99 = por %p97, %p98
      %s101 = sadd.s32 %s100, 1
      %p104 = scmp.eq.s32.totalorder %s19, 1
      %p105 = scmp.ne.s32.totalorder %s100, %s102
      %p106 = scmp.eq.s32.totalorder %s19, 0
      %p107 = por %p105, %p106
      %p108 = scmp.ne.s32.totalorder %s100, %s102
      %p109 = scmp.eq.s32.totalorder %s24, 1
      %p110 = por %p108, %p109
      %p111 = scmp.ne.s32.totalorder %s102, %s103
      %p112 = scmp.eq.s32.totalorder %s24, 0
      %p113 = por %p111, %p112
      %p114 = scmp.ne.s32.totalorder %s102, %s103
      %p115 = scmp.eq.s32.totalorder %s25, 1
      %p116 = por %p114, %p115
      %p118 = scmp.ne.s32.totalorder %s103, %s117
      %p119 = scmp.eq.s32.totalorder %s25, 0
      %p120 = por %p118, %p119
      %s122 = sadd.s32 %s121, 1
      %p125 = scmp.eq.s32.totalorder %s19, 1
      %p126 = scmp.ne.s32.totalorder %s121, %s123
      %p127 = scmp.eq.s32.totalorder %s19, 0
      %p128 = por %p126, %p127
      %p129 = scmp.ne.s32.totalorder %s121, %s123
      %p130 = scmp.eq.s32.totalorder %s24, 1
      %p131 = por %p129, %p130
      %p132 = scmp.ne.s32.totalorder %s123, %s124
      %p133 = scmp.eq.s32.totalorder %s24, 0
      %p134 = por %p132, %p133
      %p135 = scmp.ne.s32.totalorder %s123, %s124
      %p136 = scmp.eq.s32.totalorder %s25, 1
      %p137 = por %p135, %p136
      %p139 = scmp.ne.s32.totalorder %s124, %s138
      %p140 = scmp.eq.s32.totalorder %s25, 0
      %p141 = por %p139, %p140
      %s143 = sadd.s32 %s142, 1
      %p146 = scmp.eq.s32.totalorder %s19, 1
      %p147 = scmp.ne.s32.totalorder %s142, %s144
      %p148 = scmp.eq.s32.totalorder %s19, 0
      %p149 = por %p147, %p148
      %p150 = scmp.ne.s32.totalorder %s142, %s144
      %p151 = scmp.eq.s32.totalorder %s24, 1
      %p152 = por %p150, %p151
      %p153 = scmp.ne.s32.totalorder %s144, %s145
      %p154 = scmp.eq.s32.totalorder %s24, 0
      %p155 = por %p153, %p154
      %p156 = scmp.ne.s32.totalorder %s144, %s145
      %p157 = scmp.eq.s32.totalorder %s25, 1
      %p158 = por %p156, %p157
      %p160 = scmp.ne.s32.totalorder %s145, %s159
      %p161 = scmp.eq.s32.totalorder %s25, 0
      %p162 = por %p160, %p161
      %s164 = sadd.s32 %s163, 1
      %p167 = scmp.eq.s32.totalorder %s19, 1
      %p168 = scmp.ne.s32.totalorder %s163, %s165
      %p169 = scmp.eq.s32.totalorder %s19, 0
      %p170 = por %p168, %p169
      %p171 = scmp.ne.s32.totalorder %s163, %s165
      %p172 = scmp.eq.s32.totalorder %s24, 1
      %p173 = por %p171, %p172
      %p174 = scmp.ne.s32.totalorder %s165, %s166
      %p175 = scmp.eq.s32.totalorder %s24, 0
      %p176 = por %p174, %p175
      %p177 = scmp.ne.s32.totalorder %s165, %s166
      %p178 = scmp.eq.s32.totalorder %s25, 1
      %p179 = por %p177, %p178
      %p181 = scmp.ne.s32.totalorder %s166, %s180
      %p182 = scmp.eq.s32.totalorder %s25, 0
      %p183 = por %p181, %p182
      %s185 = sadd.s32 %s184, 1
      %p188 = scmp.eq.s32.totalorder %s19, 1
      %p189 = scmp.ne.s32.totalorder %s184, %s186
      %p190 = scmp.eq.s32.totalorder %s19, 0
      %p191 = por %p189, %p190
      %p192 = scmp.ne.s32.totalorder %s184, %s186
      %p193 = scmp.eq.s32.totalorder %s24, 1
      %p194 = por %p192, %p193
      %p195 = scmp.ne.s32.totalorder %s186, %s187
      %p196 = scmp.eq.s32.totalorder %s24, 0
      %p197 = por %p195, %p196
      %p198 = scmp.ne.s32.totalorder %s186, %s187
      %p199 = scmp.eq.s32.totalorder %s25, 1
      %p200 = por %p198, %p199
      %p202 = scmp.ne.s32.totalorder %s187, %s201
      %p203 = scmp.eq.s32.totalorder %s25, 0
      %p204 = por %p202, %p203
      %s206 = sadd.s32 %s205, 1
      %p209 = scmp.eq.s32.totalorder %s19, 1
      %p210 = scmp.ne.s32.totalorder %s205, %s207
      %p211 = scmp.eq.s32.totalorder %s19, 0
      %p212 = por %p210, %p211
      %p213 = scmp.ne.s32.totalorder %s205, %s207
      %p214 = scmp.eq.s32.totalorder %s24, 1
      %p215 = por %p213, %p214
      %p216 = scmp.ne.s32.totalorder %s207, %s208
      %p217 = scmp.eq.s32.totalorder %s24, 0
      %p218 = por %p216, %p217
      %p219 = scmp.ne.s32.totalorder %s207, %s208
      %p220 = scmp.eq.s32.totalorder %s25, 1
      %p221 = por %p219, %p220
      %p223 = scmp.ne.s32.totalorder %s208, %s222
      %p224 = scmp.eq.s32.totalorder %s25, 0
      %p225 = por %p223, %p224
      %s227 = sadd.s32 %s226, 1
      %p230 = scmp.eq.s32.totalorder %s19, 1
      %p231 = scmp.ne.s32.totalorder %s226, %s228
      %p232 = scmp.eq.s32.totalorder %s19, 0
      %p233 = por %p231, %p232
      %p234 = scmp.ne.s32.totalorder %s226, %s228
      %p235 = scmp.eq.s32.totalorder %s24, 1
      %p236 = por %p234, %p235
      %p237 = scmp.ne.s32.totalorder %s228, %s229
      %p238 = scmp.eq.s32.totalorder %s24, 0
      %p239 = por %p237, %p238
      %p240 = scmp.ne.s32.totalorder %s228, %s229
      %p241 = scmp.eq.s32.totalorder %s25, 1
      %p242 = por %p240, %p241
      %p244 = scmp.ne.s32.totalorder %s229, %s243
      %p245 = scmp.eq.s32.totalorder %s25, 0
      %p246 = por %p244, %p245
      %s247 = ssub.s32 %s19, %s26
      %p248 = scmp.eq.s32.totalorder %s247, 0
      %s250 = sadd.s32 %s249, 1
      %s251 = scalar_select %p248, %s249, %s250
      %p254 = pneg %p248
      %p255 = scmp.eq.s32.totalorder %s19, 1
      %p256 = por %p254, %p255
      %p257 = scmp.ne.s32.totalorder %s249, %s252
      %p258 = scmp.eq.s32.totalorder %s19, 0
      %p259 = por %p257, %p258
      %p260 = scmp.ne.s32.totalorder %s249, %s252
      %p261 = scmp.eq.s32.totalorder %s24, 1
      %p262 = por %p260, %p261
      %p263 = scmp.ne.s32.totalorder %s252, %s253
      %p264 = scmp.eq.s32.totalorder %s24, 0
      %p265 = por %p263, %p264
      %p266 = scmp.ne.s32.totalorder %s252, %s253
      %p267 = scmp.eq.s32.totalorder %s25, 1
      %p268 = por %p266, %p267
      %p270 = scmp.ne.s32.totalorder %s253, %s269
      %p271 = scmp.eq.s32.totalorder %s25, 0
      %p272 = por %p270, %p271
      %p273 = scmp.le.s32.totalorder 1, %s19
      %p274 = scmp.lt.s32.totalorder %s19, 3
      %p275 = pnand %p273, %p274
      %p276 = pneg %p275
      // Predicated region
      $region9: #{fft_block_forward.5} parent=5 // pred_check
        _
      $region10: #{fft_block_forward.5} parent=5 // pred_check_branch
        %278 = sbr.rel (%p275) target = $region12
      $region11: #{fft_block_forward.5} parent=5 // pred_region
        %s279 = ssub.s32 %s19, 1
        // Predicated region
        $region13: #{fft_block_forward.5} parent=11 // pred_check
          %p280 = pneg %p92
        $region14: #{fft_block_forward.5} parent=11 // pred_check_branch
          %282 = sbr.rel (%p280) target = $region16
        $region15: #{fft_block_forward.5} parent=11 // pred_region
          _
        $region16: #{fft_block_forward.5} parent=11 // pred_fallthru
          _
        // Predicated region
        $region17: #{fft_block_forward.5} parent=11 // pred_check
          %p283 = pneg %p113
        $region18: #{fft_block_forward.5} parent=11 // pred_check_branch
          %285 = sbr.rel (%p283) target = $region20
        $region19: #{fft_block_forward.5} parent=11 // pred_region
          _
        $region20: #{fft_block_forward.5} parent=11 // pred_fallthru
          _
        // Predicated region
        $region21: #{fft_block_forward.5} parent=11 // pred_check
          %p286 = pneg %p134
        $region22: #{fft_block_forward.5} parent=11 // pred_check_branch
          %288 = sbr.rel (%p286) target = $region24
        $region23: #{fft_block_forward.5} parent=11 // pred_region
          _
        $region24: #{fft_block_forward.5} parent=11 // pred_fallthru
          _
        // Predicated region
        $region25: #{fft_block_forward.5} parent=11 // pred_check
          %p289 = pneg %p155
        $region26: #{fft_block_forward.5} parent=11 // pred_check_branch
          %291 = sbr.rel (%p289) target = $region28
        $region27: #{fft_block_forward.5} parent=11 // pred_region
          _
        $region28: #{fft_block_forward.5} parent=11 // pred_fallthru
          _
        // Predicated region
        $region29: #{fft_block_forward.5} parent=11 // pred_check
          %p292 = pneg %p176
        $region30: #{fft_block_forward.5} parent=11 // pred_check_branch
          %294 = sbr.rel (%p292) target = $region32
        $region31: #{fft_block_forward.5} parent=11 // pred_region
          _
        $region32: #{fft_block_forward.5} parent=11 // pred_fallthru
          _
        // Predicated region
        $region33: #{fft_block_forward.5} parent=11 // pred_check
          %p295 = pneg %p197
        $region34: #{fft_block_forward.5} parent=11 // pred_check_branch
          %297 = sbr.rel (%p295) target = $region36
        $region35: #{fft_block_forward.5} parent=11 // pred_region
          _
        $region36: #{fft_block_forward.5} parent=11 // pred_fallthru
          _
        // Predicated region
        $region37: #{fft_block_forward.5} parent=11 // pred_check
          %p298 = pneg %p218
        $region38: #{fft_block_forward.5} parent=11 // pred_check_branch
          %300 = sbr.rel (%p298) target = $region40
        $region39: #{fft_block_forward.5} parent=11 // pred_region
          _
        $region40: #{fft_block_forward.5} parent=11 // pred_fallthru
          _
        // Predicated region
        $region41: #{fft_block_forward.5} parent=11 // pred_check
          %p301 = pneg %p239
        $region42: #{fft_block_forward.5} parent=11 // pred_check_branch
          %303 = sbr.rel (%p301) target = $region44
        $region43: #{fft_block_forward.5} parent=11 // pred_region
          _
        $region44: #{fft_block_forward.5} parent=11 // pred_fallthru
          _
      $region12: #{fft_block_forward.5} parent=5 // pred_fallthru
        _
      %p304 = scmp.lt.s32.totalorder %s19, 2
      // Predicated region
      $region45: #{fft_block_forward.5} parent=5 // pred_check
        %p305 = pneg %p304
      $region46: #{fft_block_forward.5} parent=5 // pred_check_branch
        %307 = sbr.rel (%p305) target = $region48
      $region47: #{fft_block_forward.5} parent=5 // pred_region
        // Predicated region
        $region49: #{fft_block_forward.5} parent=47 // pred_check
          %p308 = pneg %p39
        $region50: #{fft_block_forward.5} parent=47 // pred_check_branch
          %310 = sbr.rel (%p308) target = $region52
        $region51: #{fft_block_forward.5} parent=47 // pred_region
          %p311 = scmp.lt.s32.totalorder %s19, 1
          %s312 = scalar_select %p311, %s19, 1
          %s313 = smul.addr %s312, 4
          %s314 = smul.addr %s313, 8
          %s315 = scalar_lea.vmem %s0, %s314
        $region52: #{fft_block_forward.5} parent=47 // pred_fallthru
          _
        // Predicated region
        $region53: #{fft_block_forward.5} parent=47 // pred_check
          %p316 = pneg %p65
        $region54: #{fft_block_forward.5} parent=47 // pred_check_branch
          %318 = sbr.rel (%p316) target = $region56
        $region55: #{fft_block_forward.5} parent=47 // pred_region
          %p319 = scmp.lt.s32.totalorder %s19, 1
          %s320 = scalar_select %p319, %s19, 1
          %s321 = smul.addr %s320, 2
          %s322 = smul.addr %s321, 8
          %s323 = scalar_lea.vmem %s1, %s322
        $region56: #{fft_block_forward.5} parent=47 // pred_fallthru
          _
      $region48: #{fft_block_forward.5} parent=5 // pred_fallthru
        _
      %p324 = scmp.le.s32.totalorder 1, %s19
      %p325 = scmp.lt.s32.totalorder %s19, 3
      %p326 = pnand %p324, %p325
      %p327 = pneg %p326
      // Predicated region
      $region57: #{fft_block_forward.5} parent=5 // pred_check
        _
      $region58: #{fft_block_forward.5} parent=5 // pred_check_branch
        %329 = sbr.rel (%p326) target = $region60
      $region59: #{fft_block_forward.5} parent=5 // pred_region
        %s330 = ssub.s32 %s19, 1
        %p331 = scmp.lt.s32.totalorder %s24, 1
        %s332 = scalar_select %p331, %s24, 1
        %s333 = smul.addr %s332, 4
        %s334 = smul.addr %s333, 8
        %s335 = scalar_lea.vmem %s0, %s334
        %p336 = pneg %p45
        %p337 = pneg %p42
        %p338 = scmp.lt.s32.totalorder %s24, 1
        %s339 = scalar_select %p338, %s24, 1
        %s340 = smul.addr %s339, 2
        %s341 = smul.addr %s340, 8
        %s342 = scalar_lea.vmem %s1, %s341
        %p343 = pneg %p71
        %p344 = pneg %p68
        %p345 = pneg %p92
        %p346 = pneg %p89
        %p347 = pneg %p113
        %p348 = pneg %p110
        %p349 = pneg %p134
        %p350 = pneg %p131
        %p351 = pneg %p155
        %p352 = pneg %p152
        %p353 = pneg %p176
        %p354 = pneg %p173
        %p355 = pneg %p197
        %p356 = pneg %p194
        %p357 = pneg %p218
        %p358 = pneg %p215
        %p359 = pneg %p239
        %p360 = pneg %p236
        %p361 = pneg %p265
        %p362 = pneg %p262
        %s363 = sand.u32 %s252, 1
        %s364 = scalar_lea.sflag [#allocation5], %s363
        %s365 = sand.u32 %s252, 1
        %s366 = smul.addr %s365, 16
        %s367 = scalar_lea.vmem [#allocation4], %s366
        %p368 = scmp.lt.s32.totalorder %s24, 1
        %s369 = scalar_select %p368, %s24, 1
        %s370 = smul.addr %s369, 4
        %s371 = smul.addr %s370, 8
        %s372 = scalar_lea.vmem %s0, %s371
        %p373 = scmp.lt.s32.totalorder %s24, 1
        %s374 = scalar_select %p373, %s24, 1
        %s375 = smul.addr %s374, 2
        %s376 = smul.addr %s375, 8
        %s377 = scalar_lea.vmem %s1, %s376
        %v378 = vld [vmem:[%s372] sm:$0xff]
        %v379 = vld [vmem:[%s372 + $0x8] sm:$0xff]
        %v380 = vld [vmem:[%s372 + $0x10] sm:$0xff]
        %v381 = vld [vmem:[%s372 + $0x18] sm:$0xff]
        %382 = vxpose.xlu0.b32.start [1/16] %v378, 128
        %383 = vxpose.xlu0.b32.cont [2/16] %v379, 128
        %384 = vxpose.xlu0.b32.cont [3/16] %v380, 128
        %385 = vxpose.xlu0.b32.cont [4/16] %v381, 128
        %386 = vxpose.xlu0.b32.cont [5/16] 0.0, 128
        %387 = vxpose.xlu0.b32.cont [6/16] 0.0, 128
        %388 = vxpose.xlu0.b32.cont [7/16] 0.0, 128
        %389 = vxpose.xlu0.b32.cont [8/16] 0.0, 128
        %390 = vxpose.xlu0.b32.cont [9/16] 0.0, 128
        %391 = vxpose.xlu0.b32.cont [10/16] 0.0, 128
        %392 = vxpose.xlu0.b32.cont [11/16] 0.0, 128
        %393 = vxpose.xlu0.b32.cont [12/16] 0.0, 128
        %394 = vxpose.xlu0.b32.cont [13/16] 0.0, 128
        %395 = vxpose.xlu0.b32.cont [14/16] 0.0, 128
        %396 = vxpose.xlu0.b32.cont [15/16] 0.0, 128
        %397 = vxpose.xlu0.b32.end [16/16] 0.0, 128
        %v398 = vpop.trf.xlu0
        %v399 = vpop.trf.xlu0
        %v400 = vpop.trf.xlu0
        %v401 = vpop.trf.xlu0
        %v402 = vpop.trf.xlu0
        %v403 = vpop.trf.xlu0
        %v404 = vpop.trf.xlu0
        %v405 = vpop.trf.xlu0
        %v406 = vpop.trf.xlu0
        %v407 = vpop.trf.xlu0
        %v408 = vpop.trf.xlu0
        %v409 = vpop.trf.xlu0
        %v410 = vpop.trf.xlu0
        %v411 = vpop.trf.xlu0
        %v412 = vpop.trf.xlu0
        %v413 = vpop.trf.xlu0
        %416 = vrot.lane.b32.xlu0 %v398, 32
        %v417 = vpop.permute.xlu0 %416
        %418 = vrot.lane.b32.xlu0 %v399, 32
        %v419 = vpop.permute.xlu0 %418
        %vm422 = vcmask 523520
        %423 = vst.msk [vmem:[#allocation2] sm:$0xff] %vm422, %v417
        %424 = vst.msk [vmem:[#allocation2 + $0x8] sm:$0xff] %vm422, %v419
        %vm425 = vcmask 261120
        %426 = vst.msk [vmem:[#allocation2 + $0x1] sm:$0xff] %vm425, %v398
        %vm427 = vcmask 260096
        %428 = vst.msk [vmem:[#allocation2 + $0x9] sm:$0x7f] %vm427, %v399
        %vm429 = vcmask 253952
        %430 = vst.msk [vmem:[#allocation2] sm:$0x1] %vm429, 0.0
        %431 = vrot.lane.b32.xlu0 %v398, 64
        %v432 = vpop.permute.xlu0 %431
        %433 = vrot.lane.b32.xlu0 %v399, 64
        %v434 = vpop.permute.xlu0 %433
        %vm437 = vcmask 785921
        %438 = vst.msk [vmem:[#allocation2 - $0x1] sm:$0xfe] %vm437, %v432
        %vm439 = vcmask 785920
        %440 = vst.msk [vmem:[#allocation2 + $0x7] sm:$0xff] %vm439, %v434
        %vm441 = vcmask 778752
        %442 = vst.msk [vmem:[#allocation2 + $0xf] sm:$0x1] %vm441, 0.0
        %v443 = vld [vmem:[#allocation2] sm:$0xff]
        %v444 = vld [vmem:[#allocation2 + $0x8] sm:$0xff]
        %v445 = vld [vmem:[%s4] sm:$0xff]
        %v446 = vld [vmem:[%s4 + $0x8] sm:$0xff]
        %v447 = vld [vmem:[%s4 + $0x10] sm:$0xff]
        %v448 = vld [vmem:[%s4 + $0x18] sm:$0xff]
        %v449 = vld [vmem:[%s4 + $0x20] sm:$0xff]
        %v450 = vld [vmem:[%s4 + $0x28] sm:$0xff]
        %v451 = vld [vmem:[%s4 + $0x30] sm:$0xff]
        %v452 = vld [vmem:[%s4 + $0x38] sm:$0xff]
        %v453 = vld [vmem:[%s4 + $0x40] sm:$0xff]
        %v454 = vld [vmem:[%s4 + $0x48] sm:$0xff]
        %v455 = vld [vmem:[%s4 + $0x50] sm:$0xff]
        %v456 = vld [vmem:[%s4 + $0x58] sm:$0xff]
        %v457 = vld [vmem:[%s5] sm:$0x1]
        %v459 = vperm.slane %v457, 0
        %vm461 = vcmask 785408
        %v463 = vsel %vm461, %v443, 0
        %v466 = vsel %vm461, %v444, 0
        %468 = vmatpush.msra.mxu0 0.0
        %469 = vmatpush.msra.mxu0 0.0
        %470 = vmatpush.msra.mxu0 0.0
        %471 = vmatpush.msra.mxu0 0.0
        %472 = vmatpush.msra.mxu0 %v456
        %473 = vmatpush.msra.mxu0 %v455
        %474 = vmatpush.msra.mxu0 %v454
        %475 = vmatpush.msra.mxu0 %v453
        %476 = vmatpush.msra.mxu0 %v452
        %477 = vmatpush.msra.mxu0 %v451
        %478 = vmatpush.msra.mxu0 %v450
        %479 = vmatpush.msra.mxu0 %v449
        %480 = vmatpush.msra.mxu0 %v448
        %481 = vmatpush.msra.mxu0 %v447
        %482 = vmatpush.msra.mxu0 %v446
        %483 = vmatpush.msra.mxu0 %v445
        %484 = vmatmul.f32.gmra.mxu0 %v463
        %v485 = vpop.f32.mrf.mxu0
        %v486 = vadd.f32 %v459, %v485
        %487 = vmatmul.f32.gmra.mxu0 %v466
        %v488 = vpop.f32.mrf.mxu0
        %v489 = vadd.f32 %v459, %v488
        %490 = vdwg.mxu0
        %v491 = vld [vmem:[%s377] sm:$0xff]
        %v492 = vld [vmem:[%s377 + $0x8] sm:$0xff]
        %v493 = vadd.f32 %v486, %v491
        %v494 = vadd.f32 %v489, %v492
        %v495 = vld [vmem:[%s2] sm:$0x1]
        %v496 = vld [vmem:[%s3] sm:$0x1]
        %v497 = vsel %vm425, %v493, 0.0
        %498 = vadd.xlane.f32.xlu0 %v497
        %v499 = vpop.xlane.xlu0 %498
        %v500 = vsel %vm425, %v494, 0.0
        %501 = vadd.xlane.f32.xlu0 %v500
        %v502 = vpop.xlane.xlu0 %501
        %v503 = vrcp.pop 32.0
        %v504 = vmul.f32 32.0, %v503
        %v505 = vsub.f32 1.0, %v504
        %v506 = vmul.f32 %v503, %v505
        %v507 = vadd.f32 %v503, %v506
        %vm508 = vweird.f32 %v503
        %v509 = vsel %vm508, %v503, %v507
        %v510 = vmul.f32 %v499, %v509
        %v511 = vmul.f32 %v502, %v509
        %v512 = vsub.f32 %v493, %v510
        %v513 = vsub.f32 %v494, %v511
        %v514 = vmul.f32 %v512, %v512
        %v515 = vmul.f32 %v513, %v513
        %v516 = vsel %vm425, %v514, 0.0
        %517 = vadd.xlane.f32.xlu0 %v516
        %v518 = vpop.xlane.xlu0 %517
        %v519 = vsel %vm425, %v515, 0.0
        %520 = vadd.xlane.f32.xlu0 %v519
        %v521 = vpop.xlane.xlu0 %520
        %v522 = vmul.f32 %v518, %v509
        %v523 = vmul.f32 %v521, %v509
        %v524 = vadd.f32 %v522, 1e-05
        %v525 = vadd.f32 %v523, 1e-05
        %v526 = vrsqrt.pop %v524
        %v527 = vmul.f32 %v526, %v524
        %v528 = vmul.f32 %v527, %v526
        %v529 = vmul.f32 0.5, %v528
        %v530 = vsub.f32 1.5, %v529
        %v531 = vmul.f32 %v526, %v530
        %vm532 = vweird.f32 %v524
        %vm533 = vweird.f32 %v526
        %vm534 = vmor %vm532, %vm533
        %v535 = vsel %vm534, %v526, %v531
        %v536 = vrsqrt.pop %v525
        %v537 = vmul.f32 %v536, %v525
        %v538 = vmul.f32 %v537, %v536
        %v539 = vmul.f32 0.5, %v538
        %v540 = vsub.f32 1.5, %v539
        %v541 = vmul.f32 %v536, %v540
        %vm542 = vweird.f32 %v525
        %vm543 = vweird.f32 %v536
        %vm544 = vmor %vm542, %vm543
        %v545 = vsel %vm544, %v536, %v541
        %v546 = vmul.f32 %v512, %v535
        %v547 = vmul.f32 %v513, %v545
        %v549 = vperm.slane %v495, 0
        %v551 = vmul.f32 %v546, %v549
        %v552 = vmul.f32 %v547, %v549
        %v554 = vperm.slane %v496, 0
        %v556 = vadd.f32 %v551, %v554
        %v557 = vadd.f32 %v552, %v554
        %560 = vrot.lane.b32.xlu0 %v556, 32
        %v561 = vpop.permute.xlu0 %560
        %562 = vrot.lane.b32.xlu0 %v557, 32
        %v563 = vpop.permute.xlu0 %562
        %566 = vst.msk [vmem:[#allocation2] sm:$0xff] %vm422, %v561
        %567 = vst.msk [vmem:[#allocation2 + $0x8] sm:$0xff] %vm422, %v563
        %568 = vst.msk [vmem:[#allocation2 + $0x1] sm:$0xff] %vm425, %v556
        %569 = vst.msk [vmem:[#allocation2 + $0x9] sm:$0x7f] %vm427, %v557
        %570 = vst.msk [vmem:[#allocation2] sm:$0x1] %vm429, 0.0
        %571 = vrot.lane.b32.xlu0 %v556, 64
        %v572 = vpop.permute.xlu0 %571
        %573 = vrot.lane.b32.xlu0 %v557, 64
        %v574 = vpop.permute.xlu0 %573
        %577 = vst.msk [vmem:[#allocation2 - $0x1] sm:$0xfe] %vm437, %v572
        %578 = vst.msk [vmem:[#allocation2 + $0x7] sm:$0xff] %vm439, %v574
        %579 = vst.msk [vmem:[#allocation2 + $0xf] sm:$0x1] %vm441, 0.0
        %v580 = vld [vmem:[#allocation2] sm:$0xff]
        %v581 = vld [vmem:[#allocation2 + $0x8] sm:$0xff]
        %v582 = vld [vmem:[%s6] sm:$0xff]
        %v583 = vld [vmem:[%s6 + $0x8] sm:$0xff]
        %v584 = vld [vmem:[%s6 + $0x10] sm:$0xff]
        %v585 = vld [vmem:[%s6 + $0x18] sm:$0xff]
        %v586 = vld [vmem:[%s6 + $0x20] sm:$0xff]
        %v587 = vld [vmem:[%s6 + $0x28] sm:$0xff]
        %v588 = vld [vmem:[%s6 + $0x30] sm:$0xff]
        %v589 = vld [vmem:[%s6 + $0x38] sm:$0xff]
        %v590 = vld [vmem:[%s6 + $0x40] sm:$0xff]
        %v591 = vld [vmem:[%s6 + $0x48] sm:$0xff]
        %v592 = vld [vmem:[%s6 + $0x50] sm:$0xff]
        %v593 = vld [vmem:[%s6 + $0x58] sm:$0xff]
        %v594 = vld [vmem:[%s7] sm:$0x1]
        %v596 = vperm.slane %v594, 0
        %v599 = vsel %vm461, %v580, 0
        %v602 = vsel %vm461, %v581, 0
        %604 = vmatpush.msra.mxu0 0.0
        %605 = vmatpush.msra.mxu0 0.0
        %606 = vmatpush.msra.mxu0 0.0
        %607 = vmatpush.msra.mxu0 0.0
        %608 = vmatpush.msra.mxu0 %v593
        %609 = vmatpush.msra.mxu0 %v592
        %610 = vmatpush.msra.mxu0 %v591
        %611 = vmatpush.msra.mxu0 %v590
        %612 = vmatpush.msra.mxu0 %v589
        %613 = vmatpush.msra.mxu0 %v588
        %614 = vmatpush.msra.mxu0 %v587
        %615 = vmatpush.msra.mxu0 %v586
        %616 = vmatpush.msra.mxu0 %v585
        %617 = vmatpush.msra.mxu0 %v584
        %618 = vmatpush.msra.mxu0 %v583
        %619 = vmatpush.msra.mxu0 %v582
        %620 = vmatmul.f32.gmra.mxu0 %v599
        %v621 = vpop.f32.mrf.mxu0
        %v622 = vadd.f32 %v596, %v621
        %623 = vmatmul.f32.gmra.mxu0 %v602
        %v624 = vpop.f32.mrf.mxu0
        %v625 = vadd.f32 %v596, %v624
        %626 = vdwg.mxu0
        %v627 = vmax.f32 %v622, 0.0
        %v628 = vmax.f32 %v625, 0.0
        %631 = vrot.lane.b32.xlu0 %v627, 64
        %v632 = vpop.permute.xlu0 %631
        %633 = vrot.lane.b32.xlu0 %v628, 64
        %v634 = vpop.permute.xlu0 %633
        %vm637 = vcmask 1048064
        %638 = vst.msk [vmem:[#allocation3] sm:$0xff] %vm637, %v632
        %639 = vst.msk [vmem:[#allocation3 + $0x10] sm:$0xff] %vm637, %v634
        %vm640 = vcmask 1040384
        %v641 = vrot.slane %v627, 7
        %v642 = vrot.slane %v628, 7
        %v643 = vsel %vm640, %v641, %v642
        %vm646 = vcmask 523265
        %647 = vst.msk [vmem:[#allocation3] sm:$0xfe] %vm646, %v641
        %vm648 = vcmask 523264
        %649 = vst.msk [vmem:[#allocation3 + $0x10] sm:$0xff] %vm648, %v643
        %vm650 = vcmask 516096
        %651 = vst.msk [vmem:[#allocation3] sm:$0x1] %vm650, 0.0
        %vm652 = vcmask 1046528
        %v653 = vrot.slane %v627, 1
        %v654 = vrot.slane %v628, 1
        %v655 = vsel %vm652, %v653, %v654
        %658 = vst.msk [vmem:[#allocation3 + $0x8] sm:$0xff] %vm648, %v655
        %vm659 = vcmask 522240
        %660 = vst.msk [vmem:[#allocation3 + $0x18] sm:$0x7f] %vm659, %v654
        %661 = vst.msk [vmem:[#allocation3 + $0x1f] sm:$0x1] %vm650, 0.0
        %v662 = vld [vmem:[#allocation3] sm:$0xff]
        %v663 = vld [vmem:[#allocation3 + $0x8] sm:$0xff]
        %v664 = vld [vmem:[#allocation3 + $0x10] sm:$0xff]
        %v665 = vld [vmem:[#allocation3 + $0x18] sm:$0xff]
        %v666 = vld [vmem:[%s8] sm:$0xff]
        %v667 = vld [vmem:[%s8 + $0x8] sm:$0xff]
        %v668 = vld [vmem:[%s8 + $0x10] sm:$0xff]
        %v669 = vld [vmem:[%s8 + $0x18] sm:$0xff]
        %v670 = vld [vmem:[%s8 + $0x20] sm:$0xff]
        %v671 = vld [vmem:[%s8 + $0x28] sm:$0xff]
        %v672 = vld [vmem:[%s8 + $0x30] sm:$0xff]
        %v673 = vld [vmem:[%s8 + $0x38] sm:$0xff]
        %v674 = vld [vmem:[%s8 + $0x40] sm:$0xff]
        %v675 = vld [vmem:[%s8 + $0x48] sm:$0xff]
        %v676 = vld [vmem:[%s8 + $0x50] sm:$0xff]
        %v677 = vld [vmem:[%s8 + $0x58] sm:$0xff]
        %v678 = vld [vmem:[%s8 + $0x60] sm:$0xff]
        %v679 = vld [vmem:[%s8 + $0x68] sm:$0xff]
        %v680 = vld [vmem:[%s8 + $0x70] sm:$0xff]
        %v681 = vld [vmem:[%s8 + $0x78] sm:$0xff]
        %v682 = vld [vmem:[%s8 + $0x80] sm:$0xff]
        %v683 = vld [vmem:[%s8 + $0x88] sm:$0xff]
        %v684 = vld [vmem:[%s8 + $0x90] sm:$0xff]
        %v685 = vld [vmem:[%s8 + $0x98] sm:$0xff]
        %v686 = vld [vmem:[%s8 + $0xa0] sm:$0xff]
        %v687 = vld [vmem:[%s8 + $0xa8] sm:$0xff]
        %v688 = vld [vmem:[%s8 + $0xb0] sm:$0xff]
        %v689 = vld [vmem:[%s8 + $0xb8] sm:$0xff]
        %v690 = vld [vmem:[%s9] sm:$0x1]
        %v692 = vperm.slane %v690, 0
        %v695 = vsel %vm648, %v663, 0
        %v698 = vsel %vm648, %v665, 0
        %700 = vmatpush.msra.mxu0 %v681
        %701 = vmatpush.msra.mxu0 %v680
        %702 = vmatpush.msra.mxu0 %v679
        %703 = vmatpush.msra.mxu0 %v678
        %704 = vmatpush.msra.mxu0 %v677
        %705 = vmatpush.msra.mxu0 %v676
        %706 = vmatpush.msra.mxu0 %v675
        %707 = vmatpush.msra.mxu0 %v674
        %708 = vmatpush.msra.mxu0 %v673
        %709 = vmatpush.msra.mxu0 %v672
        %710 = vmatpush.msra.mxu0 %v671
        %711 = vmatpush.msra.mxu0 %v670
        %712 = vmatpush.msra.mxu0 %v669
        %713 = vmatpush.msra.mxu0 %v668
        %714 = vmatpush.msra.mxu0 %v667
        %715 = vmatpush.msra.mxu0 %v666
        %716 = vmatmul.f32.gmra.mxu0 %v662
        %v717 = vpop.f32.mrf.mxu0
        %v718 = vadd.f32 %v692, %v717
        %719 = vmatmul.f32.gmra.mxu0 %v664
        %v720 = vpop.f32.mrf.mxu0
        %v721 = vadd.f32 %v692, %v720
        %722 = vdwg.mxu0
        %723 = vmatpush.msra.mxu0 0.0
        %724 = vmatpush.msra.mxu0 0.0
        %725 = vmatpush.msra.mxu0 0.0
        %726 = vmatpush.msra.mxu0 0.0
        %727 = vmatpush.msra.mxu0 0.0
        %728 = vmatpush.msra.mxu0 0.0
        %729 = vmatpush.msra.mxu0 0.0
        %730 = vmatpush.msra.mxu0 0.0
        %731 = vmatpush.msra.mxu0 %v689
        %732 = vmatpush.msra.mxu0 %v688
        %733 = vmatpush.msra.mxu0 %v687
        %734 = vmatpush.msra.mxu0 %v686
        %735 = vmatpush.msra.mxu0 %v685
        %736 = vmatpush.msra.mxu0 %v684
        %737 = vmatpush.msra.mxu0 %v683
        %738 = vmatpush.msra.mxu0 %v682
        %739 = vmatmul.f32.gmra.mxu0 %v695
        %v740 = vpop.f32.mrf.mxu0
        %v741 = vadd.f32 %v718, %v740
        %742 = vmatmul.f32.gmra.mxu0 %v698
        %v743 = vpop.f32.mrf.mxu0
        %v744 = vadd.f32 %v721, %v743
        %745 = vdwg.mxu0
        %v746 = vadd.f32 %v741, %v493
        %v747 = vadd.f32 %v744, %v494
        %748 = vst.msk [vmem:[%s367] sm:$0xff] %vm425, %v746
        %749 = vst.msk [vmem:[%s367 + $0x8] sm:$0xff] %vm425, %v747
        %s750 = sand.u32 %s252, 1
        %s751 = scalar_lea.sflag [#allocation5], %s750
        %s752 = sand.u32 %s252, 1
        %s753 = smul.addr %s752, 16
        %s754 = scalar_lea.vmem [#allocation4], %s753
        // Predicated region
        $region61: #{fft_block_forward.5} parent=59 // pred_check
          %p755 = pneg %p262
        $region62: #{fft_block_forward.5} parent=59 // pred_check_branch
          %757 = sbr.rel (%p755) target = $region64
        $region63: #{fft_block_forward.5} parent=59 // pred_region
          %759 = vsyncadd %s751, 0
          %s760 = smul.addr %s24, 2
          %s761 = smul.addr %s760, 8
          %s762 = scalar_lea.hbm %s10, %s761
          %s763 = sshll.u32 %s754, 4
          %s764 = int_to_ptr.vmem [resolvable:$true] %s763
          %s765 = sshll.u32 %s762, 4
          %s766 = int_to_ptr.hbm [resolvable:$true] %s765
          %771 = dma.vmem_to_hbm [thread:$0]  %s764, 256, %s766, %s751, 128, 128, 8
        $region64: #{fft_block_forward.5} parent=59 // pred_fallthru
          _
      $region60: #{fft_block_forward.5} parent=5 // pred_fallthru
        _
      %p772 = scmp.le.s32.totalorder 2, %s19
      // Predicated region
      $region65: #{fft_block_forward.5} parent=5 // pred_check
        %p773 = pneg %p772
      $region66: #{fft_block_forward.5} parent=5 // pred_check_branch
        %775 = sbr.rel (%p773) target = $region68
      $region67: #{fft_block_forward.5} parent=5 // pred_region
        %s776 = ssub.s32 %s19, 2
        // Predicated region
        $region69: #{fft_block_forward.5} parent=67 // pred_check
          %p777 = pneg %p268
        $region70: #{fft_block_forward.5} parent=67 // pred_check_branch
          %779 = sbr.rel (%p777) target = $region72
        $region71: #{fft_block_forward.5} parent=67 // pred_region
          %s780 = sand.u32 %s253, 1
          %s781 = scalar_lea.sflag [#allocation5], %s780
          %s782 = sand.u32 %s253, 1
          %s783 = smul.addr %s782, 16
          %s784 = scalar_lea.vmem [#allocation4], %s783
          %786 = dma.done %s781, 256
        $region72: #{fft_block_forward.5} parent=67 // pred_fallthru
          _
      $region68: #{fft_block_forward.5} parent=5 // pred_fallthru
        _
    $region6: #{fft_block_forward.5} parent=1 // loop_footer
      %s23 = sadd.s32 1, %s19
    $region7: #{fft_block_forward.5} parent=1 // loop_footer_branch
      %18 = sbr.rel target = $region3
    $region8: #{fft_block_forward.5} parent=1 // loop_exit
      _
    %787 = vsyncpa [#allocation5], 1
    %s788 = scalar_lea.sflag [#allocation5], 1
    %789 = vsyncpa %s788, 1

</llo_original>
